<compile_context>
chip_gen: v7x
topology: tpu7x:2x2x1
jax: 0.10.0
libtpu: 0.0.40
codegen_flags: <defaults>
</compile_context>

<pallas_src>
import functools

import jax
import jax.numpy as jnp
from jax import lax
from jax.experimental import pallas as pl
from jax.experimental.pallas import tpu as pltpu


# ---------------------------------------------------------------------------
# Fused partial-conv kernel: in-kernel tap gather + PReLU/mask prologue + renorm epilogue.
# ---------------------------------------------------------------------------
def _pconv_kernel(x_ref, m_ref, w_ref, b_ref, ain_ref, aout_ref, out_ref, mupd_ref,
                  *, taps, lq, winsize, prelu_mask_in, fuse_out_prelu, mask_scale):
    """One batch image per grid step.

    x_ref   : (P, Cin, Lpad)  activation, spatially padded + row-flattened (P = #phases).
    m_ref   : (P, Cm, Lpad)   mask in the same layout (Cm == Cin, or 1 if channel-identical).
    w_ref   : (KT, Cout, Cin) conv weight, one (Cout, Cin) slab per tap.
    b_ref   : (Cout, 1)       bias.
    ain_ref : (1, Cin, 1)     PReLU alpha for the input (read iff prelu_mask_in).
    aout_ref: (Cout, 1)       PReLU alpha for the output (read iff fuse_out_prelu).
    out_ref : (Cout, Lq)      renormalized conv output (optionally PReLU'd + re-masked).
    mupd_ref: (1, Lq)         updated mask (channel-identical -> stored compressed).

    `taps` is a static tuple of (phase_index, flat_shift), one per leading index of w_ref.
    """
    x = x_ref[...].astype(jnp.float32)                 # (P, Cin, Lpad)
    m = m_ref[...].astype(jnp.float32)                 # (P, Cm, Lpad)
    if prelu_mask_in:
        a = ain_ref[...]                               # (1, Cin, 1)
        x = jnp.where(x > 0.0, x, a * x) * m           # PReLU_in + mask multiply (once)
    ms = jnp.sum(m, axis=1)                            # (P, Lpad) channel-summed mask

    cout = out_ref.shape[0]
    acc = jnp.zeros((cout, lq), jnp.float32)
    msum = jnp.zeros((1, lq), jnp.float32)
    for t, (p, sh) in enumerate(taps):                 # static 3x3 tap loop, unrolled
        acc = acc + jnp.dot(w_ref[t].astype(jnp.float32), x[p, :, sh:sh + lq],
                            preferred_element_type=jnp.float32)
        msum = msum + ms[p:p + 1, sh:sh + lq]
    msum = msum * mask_scale

    update = jnp.clip(msum, 0.0, 1.0)
    ratio = (winsize / (msum + 1e-8)) * update         # exact divide (accuracy note)
    out = (acc * ratio + b_ref[...]) * update
    if fuse_out_prelu:
        # next layer's PReLU + its input mask-multiply, fused into this epilogue
        out = jnp.where(out > 0.0, out, aout_ref[...] * out) * update
    out_ref[...] = out.astype(out_ref.dtype)
    mupd_ref[...] = update


def _pconv_call(x, m, w9, bias, alpha_in, alpha_out, *, taps, lq, winsize,
                prelu_mask_in, fuse_out_prelu, mask_scale, out_dtype):
    """x: (B, P, Cin, Lpad), m: (B, Pm, Cm, Lpad), w9: (KT, Cout, Cin)."""
    B, P, Cin, Lpad = x.shape
    _, Pm, Cm, _ = m.shape
    KT, Cout, _ = w9.shape

    kernel = functools.partial(
        _pconv_kernel, taps=tuple(taps), lq=lq, winsize=float(winsize),
        prelu_mask_in=prelu_mask_in, fuse_out_prelu=fuse_out_prelu,
        mask_scale=float(mask_scale))

    out, upd = pl.pallas_call(
        kernel,
        out_shape=(jax.ShapeDtypeStruct((B, Cout, lq), out_dtype),
                   jax.ShapeDtypeStruct((B, 1, lq), jnp.float32)),
        grid_spec=pltpu.PrefetchScalarGridSpec(
            num_scalar_prefetch=0,
            grid=(B,),
            in_specs=[pl.BlockSpec((None, P, Cin, Lpad), lambda b: (b, 0, 0, 0)),
                      pl.BlockSpec((None, Pm, Cm, Lpad), lambda b: (b, 0, 0, 0)),
                      pl.BlockSpec((KT, Cout, Cin), lambda b: (0, 0, 0)),   # resident
                      pl.BlockSpec((Cout, 1), lambda b: (0, 0)),            # resident
                      pl.BlockSpec((1, Cin, 1), lambda b: (0, 0, 0)),       # resident
                      pl.BlockSpec((Cout, 1), lambda b: (0, 0))],           # resident
            out_specs=(pl.BlockSpec((None, Cout, lq), lambda b: (b, 0, 0)),
                       pl.BlockSpec((None, 1, lq), lambda b: (b, 0, 0)))),
        compiler_params=pltpu.CompilerParams(dimension_semantics=("parallel",)),
    )(x, m, w9.astype(jnp.float32),
      bias.reshape(Cout, 1).astype(jnp.float32),
      alpha_in.reshape(1, Cin, 1).astype(jnp.float32),
      alpha_out.reshape(Cout, 1).astype(jnp.float32))
    return out, upd


def _phase_split(a):
    """(B, C, Hp, Wp) with even Hp, Wp -> (B, 4, C, (Hp//2)*(Wp//2)); phase p = (h%2)*2+(w%2)."""
    B, C, Hp, Wp = a.shape
    a = a.reshape(B, C, Hp // 2, 2, Wp // 2, 2)
    a = jnp.transpose(a, (0, 3, 5, 1, 2, 4))           # (B, pr, pc, C, Hph, Wph)
    return a.reshape(B, 4, C, (Hp // 2) * (Wp // 2))


def downsample_forward(x_nchw, mask_nchw, params):
    """Equivalent of Downsample.forward (NCHW in / NCHW out)."""
    B, C0, H, W = x_nchw.shape
    assert H % 2 == 0 and W % 2 == 0, "Downsample expects even spatial dims"
    C1 = params["w1"].shape[3]
    C2 = params["w2"].shape[3]
    Ho, Wo = H // 2, W // 2

    # ---- layer 1: PReLU_1 + PartialConv(3x3, s=2) + fused PReLU_2 + re-mask --------------
    xp = jnp.pad(x_nchw.astype(jnp.float32), ((0, 0), (0, 0), (1, 1), (1, 1)))
    mp = jnp.pad(mask_nchw.astype(jnp.float32), ((0, 0), (0, 0), (1, 1), (1, 1)))
    Hph, Wph = (H + 2) // 2, (W + 2) // 2               # 2x2 phase-map spatial dims
    lq1 = Ho * Wph                                      # flat output: Ho rows of width Wph
    lpad1 = lq1 + Wph + 1                               # max tap shift = Wph + 1
    x1 = _phase_split(xp)                               # (B, 4, C0, Hph*Wph)
    m1 = _phase_split(mp)
    x1 = jnp.pad(x1, ((0, 0), (0, 0), (0, 0), (0, lpad1 - Hph * Wph)))
    m1 = jnp.pad(m1, ((0, 0), (0, 0), (0, 0), (0, lpad1 - Hph * Wph)))
    taps1 = tuple(((ih % 2) * 2 + (iw % 2), (ih // 2) * Wph + (iw // 2))
                  for ih in range(3) for iw in range(3))
    w9_1 = jnp.transpose(params["w1"], (0, 1, 3, 2)).reshape(9, C1, C0)
    y1, u1 = _pconv_call(
        x1, m1, w9_1, params["b1"], params["alpha1"], params["alpha2"],
        taps=taps1, lq=lq1, winsize=9 * C0, prelu_mask_in=True,
        fuse_out_prelu=True, mask_scale=1.0, out_dtype=jnp.bfloat16)

    # ---- inter-layer re-layout: drop garbage cols, re-pad spatially, re-flatten ----------
    y1 = y1.reshape(B, C1, Ho, Wph)[:, :, :, :Wo]
    u1 = u1.reshape(B, 1, Ho, Wph)[:, :, :, :Wo]
    y1p = jnp.pad(y1, ((0, 0), (0, 0), (1, 1), (1, 1)))
    u1p = jnp.pad(u1, ((0, 0), (0, 0), (1, 1), (1, 1)))
    Hp2, Wp2 = Ho + 2, Wo + 2
    lq2 = Ho * Wp2
    lpad2 = lq2 + 2 * Wp2 + 2                           # max tap shift = 2*Wp2 + 2
    x2 = jnp.pad(y1p.reshape(B, 1, C1, Hp2 * Wp2),
                 ((0, 0), (0, 0), (0, 0), (0, lpad2 - Hp2 * Wp2)))
    m2 = jnp.pad(u1p.reshape(B, 1, 1, Hp2 * Wp2),
                 ((0, 0), (0, 0), (0, 0), (0, lpad2 - Hp2 * Wp2)))
    taps2 = tuple((0, ih * Wp2 + iw) for ih in range(3) for iw in range(3))
    w9_2 = jnp.transpose(params["w2"], (0, 1, 3, 2)).reshape(9, C2, C1)

    # ---- layer 2: PartialConv(3x3, s=1); its PReLU_2 + mask multiply came fused above ----
    y2, u2 = _pconv_call(
        x2, m2, w9_2, params["b2"], jnp.zeros((C1,), jnp.float32),
        jnp.zeros((C2,), jnp.float32),
        taps=taps2, lq=lq2, winsize=9 * C1, prelu_mask_in=False,
        fuse_out_prelu=False, mask_scale=float(C1), out_dtype=jnp.float32)

    y = y2.reshape(B, C2, Ho, Wp2)[:, :, :, :Wo]
    upd = u2.reshape(B, 1, Ho, Wp2)[:, :, :, :Wo]
    m_out = jnp.broadcast_to(upd, (B, C2, Ho, Wo))
    return y, m_out


def init_params(key, int_channels):
    c0, c1, c2 = int_channels
    k1, k2, k3, k4 = jax.random.split(key, 4)
    return {
        "alpha1": jnp.full((c0,), 0.25, jnp.float32),                    # PReLU init=0.25
        "w1": 0.1 * jax.random.normal(k1, (3, 3, c0, c1), jnp.float32),  # HWIO
        "b1": 0.1 * jax.random.normal(k2, (c1,), jnp.float32),
        "alpha2": jnp.full((c1,), 0.25, jnp.float32),
        "w2": 0.1 * jax.random.normal(k3, (3, 3, c1, c2), jnp.float32),
        "b2": 0.1 * jax.random.normal(k4, (c2,), jnp.float32),
    }


def _ref_partial_conv(x, m, alpha, w, b, stride):
    """Pure-JAX f32 NHWC reference of PReLU + PartialConv2d for validation."""
    x = jnp.where(x > 0, x, alpha[None, None, None, :] * x)
    dn = ("NHWC", "HWIO", "NHWC")
    raw = lax.conv_general_dilated(x * m, w, (stride, stride), ((1, 1), (1, 1)),
                                   dimension_numbers=dn)
    msum = lax.conv_general_dilated(m, jnp.ones_like(w), (stride, stride), ((1, 1), (1, 1)),
                                    dimension_numbers=dn)
    winsize = w.shape[0] * w.shape[1] * w.shape[2]
    ratio = winsize / (msum + 1e-8)
    update = jnp.clip(msum, 0.0, 1.0)
    ratio = ratio * update
    out = (raw * ratio + b[None, None, None, :]) * update
    return out, update


if __name__ == "__main__":
    int_channels = (4, 8, 16)
    B, H, W = 2, 16, 16

    key = jax.random.PRNGKey(0)
    kx, km, kp = jax.random.split(key, 3)
    x = jax.random.normal(kx, (B, int_channels[0], H, W), jnp.float32)        # NCHW input
    mask = (jax.random.uniform(km, (B, int_channels[0], H, W)) > 0.3).astype(jnp.float32)
    params = init_params(kp, int_channels)

    fwd = jax.jit(downsample_forward)
    y, m_out = fwd(x, mask, params)
    y = jax.block_until_ready(y)
    m_out = jax.block_until_ready(m_out)

    # Validate against the pure-JAX f32 reference (inter-layer bf16 -> loosened tolerance).
    xr = jnp.transpose(x, (0, 2, 3, 1))
    mr = jnp.transpose(mask, (0, 2, 3, 1))
    yr, mr = _ref_partial_conv(xr, mr, params["alpha1"], params["w1"], params["b1"], 2)
    yr, mr = _ref_partial_conv(yr, mr, params["alpha2"], params["w2"], params["b2"], 1)
    yr = jnp.transpose(yr, (0, 3, 1, 2))
    mr = jnp.transpose(mr, (0, 3, 1, 2))

    assert y.shape == (B, int_channels[2], H // 2, W // 2)
    assert m_out.shape == y.shape
    assert jnp.allclose(y, yr, atol=5e-2, rtol=5e-2), \
        f"max abs err {float(jnp.max(jnp.abs(y - yr)))}"
    assert jnp.allclose(m_out, mr, atol=1e-5)
    print("KERNEL_OK")
</pallas_src>

<mosaic_0001>
module attributes {stable_mosaic.version = 11 : i64} {
  func.func @_pconv_kernel(%arg0: i32, %arg1: memref<1x4x4x82xf32, #tpu.memory_space<vmem>>, %arg2: memref<1x4x4x82xf32, #tpu.memory_space<vmem>>, %arg3: memref<9x8x4xf32, #tpu.memory_space<vmem>>, %arg4: memref<8x1xf32, #tpu.memory_space<vmem>>, %arg5: memref<1x4x1xf32, #tpu.memory_space<vmem>>, %arg6: memref<8x1xf32, #tpu.memory_space<vmem>>, %arg7: memref<1x8x72xbf16, #tpu.memory_space<vmem>>, %arg8: memref<1x1x72xf32, #tpu.memory_space<vmem>>) attributes {dimension_semantics = [#tpu.dimension_semantics<parallel>], iteration_bounds = array<i64: 2>, scalar_prefetch = 0 : i64, scratch_operands = 0 : i64, tpu.core_type = #tpu.core_type<tc>, window_params = [{transform_indices = @transform_0, window_bounds = array<i64: 1, 4, 4, 82>}, {transform_indices = @transform_1, window_bounds = array<i64: 1, 4, 4, 82>}, {pipeline_mode = #tpu.pipeline_mode<synchronous>, transform_indices = @transform_2, window_bounds = array<i64: 9, 8, 4>}, {pipeline_mode = #tpu.pipeline_mode<synchronous>, transform_indices = @transform_3, window_bounds = array<i64: 8, 1>}, {pipeline_mode = #tpu.pipeline_mode<synchronous>, transform_indices = @transform_4, window_bounds = array<i64: 1, 4, 1>}, {pipeline_mode = #tpu.pipeline_mode<synchronous>, transform_indices = @transform_5, window_bounds = array<i64: 8, 1>}, {transform_indices = @transform_6, window_bounds = array<i64: 1, 8, 72>}, {transform_indices = @transform_7, window_bounds = array<i64: 1, 1, 72>}]} {
    %c0 = arith.constant 0 : index
    %c0_0 = arith.constant 0 : index
    %c0_1 = arith.constant 0 : index
    %c0_2 = arith.constant 0 : index
    %0 = vector.load %arg1[%c0, %c0_0, %c0_1, %c0_2] : memref<1x4x4x82xf32, #tpu.memory_space<vmem>>, vector<1x4x4x82xf32>
    %1 = vector.shape_cast %0 : vector<1x4x4x82xf32> to vector<4x4x82xf32>
    %c0_3 = arith.constant 0 : index
    %c0_4 = arith.constant 0 : index
    %c0_5 = arith.constant 0 : index
    %c0_6 = arith.constant 0 : index
    %2 = vector.load %arg2[%c0_3, %c0_4, %c0_5, %c0_6] : memref<1x4x4x82xf32, #tpu.memory_space<vmem>>, vector<1x4x4x82xf32>
    %3 = vector.shape_cast %2 : vector<1x4x4x82xf32> to vector<4x4x82xf32>
    %c0_7 = arith.constant 0 : index
    %c0_8 = arith.constant 0 : index
    %c0_9 = arith.constant 0 : index
    %4 = vector.load %arg5[%c0_7, %c0_8, %c0_9] : memref<1x4x1xf32, #tpu.memory_space<vmem>>, vector<1x4x1xf32>
    %cst = arith.constant 0.000000e+00 : f32
    %5 = vector.broadcast %cst : f32 to vector<4x4x82xf32>
    %6 = arith.cmpf ogt, %1, %5 : vector<4x4x82xf32>
    %7 = vector.broadcast %4 : vector<1x4x1xf32> to vector<4x4x82xf32>
    %8 = arith.mulf %7, %1 : vector<4x4x82xf32>
    %9 = arith.select %6, %1, %8 : vector<4x4x82xi1>, vector<4x4x82xf32>
    %10 = arith.mulf %9, %3 : vector<4x4x82xf32>
    %cst_10 = arith.constant dense<0.000000e+00> : vector<4x82xf32>
    %11 = vector.multi_reduction <add>, %3, %cst_10 [1] : vector<4x4x82xf32> to vector<4x82xf32>
    %cst_11 = arith.constant 0.000000e+00 : f32
    %12 = vector.broadcast %cst_11 : f32 to vector<8x72xf32>
    %cst_12 = arith.constant 0.000000e+00 : f32
    %13 = vector.broadcast %cst_12 : f32 to vector<1x72xf32>
    %c0_13 = arith.constant 0 : index
    %c0_14 = arith.constant 0 : index
    %c0_15 = arith.constant 0 : index
    %14 = vector.load %arg3[%c0_13, %c0_14, %c0_15] : memref<9x8x4xf32, #tpu.memory_space<vmem>>, vector<1x8x4xf32>
    %15 = vector.shape_cast %14 : vector<1x8x4xf32> to vector<8x4xf32>
    %16 = vector.extract_strided_slice %10 {offsets = [0, 0, 0], sizes = [1, 4, 72], strides = [1, 1, 1]} : vector<4x4x82xf32> to vector<1x4x72xf32>
    %17 = vector.shape_cast %16 : vector<1x4x72xf32> to vector<4x72xf32>
    %cst_16 = arith.constant dense<0.000000e+00> : vector<8x72xf32>
    %18 = tpu.matmul %15, %17, %cst_16 {dimension_numbers = #tpu.dot_dimension_numbers<[1], [0], [0], [1], [0, 0, 1, 1], [], []>} : vector<8x4xf32>, vector<4x72xf32>, vector<8x72xf32> -> vector<8x72xf32>
    %19 = arith.addf %12, %18 : vector<8x72xf32>
    %20 = vector.extract_strided_slice %11 {offsets = [0, 0], sizes = [1, 72], strides = [1, 1]} : vector<4x82xf32> to vector<1x72xf32>
    %21 = arith.addf %13, %20 : vector<1x72xf32>
    %c1 = arith.constant 1 : index
    %c0_17 = arith.constant 0 : index
    %c0_18 = arith.constant 0 : index
    %22 = vector.load %arg3[%c1, %c0_17, %c0_18] : memref<9x8x4xf32, #tpu.memory_space<vmem>>, vector<1x8x4xf32>
    %23 = vector.shape_cast %22 : vector<1x8x4xf32> to vector<8x4xf32>
    %24 = vector.extract_strided_slice %10 {offsets = [1, 0, 0], sizes = [1, 4, 72], strides = [1, 1, 1]} : vector<4x4x82xf32> to vector<1x4x72xf32>
    %25 = vector.shape_cast %24 : vector<1x4x72xf32> to vector<4x72xf32>
    %cst_19 = arith.constant dense<0.000000e+00> : vector<8x72xf32>
    %26 = tpu.matmul %23, %25, %cst_19 {dimension_numbers = #tpu.dot_dimension_numbers<[1], [0], [0], [1], [0, 0, 1, 1], [], []>} : vector<8x4xf32>, vector<4x72xf32>, vector<8x72xf32> -> vector<8x72xf32>
    %27 = arith.addf %19, %26 : vector<8x72xf32>
    %28 = vector.extract_strided_slice %11 {offsets = [1, 0], sizes = [1, 72], strides = [1, 1]} : vector<4x82xf32> to vector<1x72xf32>
    %29 = arith.addf %21, %28 : vector<1x72xf32>
    %c2 = arith.constant 2 : index
    %c0_20 = arith.constant 0 : index
    %c0_21 = arith.constant 0 : index
    %30 = vector.load %arg3[%c2, %c0_20, %c0_21] : memref<9x8x4xf32, #tpu.memory_space<vmem>>, vector<1x8x4xf32>
    %31 = vector.shape_cast %30 : vector<1x8x4xf32> to vector<8x4xf32>
    %32 = vector.extract_strided_slice %10 {offsets = [0, 0, 1], sizes = [1, 4, 72], strides = [1, 1, 1]} : vector<4x4x82xf32> to vector<1x4x72xf32>
    %33 = vector.shape_cast %32 : vector<1x4x72xf32> to vector<4x72xf32>
    %cst_22 = arith.constant dense<0.000000e+00> : vector<8x72xf32>
    %34 = tpu.matmul %31, %33, %cst_22 {dimension_numbers = #tpu.dot_dimension_numbers<[1], [0], [0], [1], [0, 0, 1, 1], [], []>} : vector<8x4xf32>, vector<4x72xf32>, vector<8x72xf32> -> vector<8x72xf32>
    %35 = arith.addf %27, %34 : vector<8x72xf32>
    %36 = vector.extract_strided_slice %11 {offsets = [0, 1], sizes = [1, 72], strides = [1, 1]} : vector<4x82xf32> to vector<1x72xf32>
    %37 = arith.addf %29, %36 : vector<1x72xf32>
    %c3 = arith.constant 3 : index
    %c0_23 = arith.constant 0 : index
    %c0_24 = arith.constant 0 : index
    %38 = vector.load %arg3[%c3, %c0_23, %c0_24] : memref<9x8x4xf32, #tpu.memory_space<vmem>>, vector<1x8x4xf32>
    %39 = vector.shape_cast %38 : vector<1x8x4xf32> to vector<8x4xf32>
    %40 = vector.extract_strided_slice %10 {offsets = [2, 0, 0], sizes = [1, 4, 72], strides = [1, 1, 1]} : vector<4x4x82xf32> to vector<1x4x72xf32>
    %41 = vector.shape_cast %40 : vector<1x4x72xf32> to vector<4x72xf32>
    %cst_25 = arith.constant dense<0.000000e+00> : vector<8x72xf32>
    %42 = tpu.matmul %39, %41, %cst_25 {dimension_numbers = #tpu.dot_dimension_numbers<[1], [0], [0], [1], [0, 0, 1, 1], [], []>} : vector<8x4xf32>, vector<4x72xf32>, vector<8x72xf32> -> vector<8x72xf32>
    %43 = arith.addf %35, %42 : vector<8x72xf32>
    %44 = vector.extract_strided_slice %11 {offsets = [2, 0], sizes = [1, 72], strides = [1, 1]} : vector<4x82xf32> to vector<1x72xf32>
    %45 = arith.addf %37, %44 : vector<1x72xf32>
    %c4 = arith.constant 4 : index
    %c0_26 = arith.constant 0 : index
    %c0_27 = arith.constant 0 : index
    %46 = vector.load %arg3[%c4, %c0_26, %c0_27] : memref<9x8x4xf32, #tpu.memory_space<vmem>>, vector<1x8x4xf32>
    %47 = vector.shape_cast %46 : vector<1x8x4xf32> to vector<8x4xf32>
    %48 = vector.extract_strided_slice %10 {offsets = [3, 0, 0], sizes = [1, 4, 72], strides = [1, 1, 1]} : vector<4x4x82xf32> to vector<1x4x72xf32>
    %49 = vector.shape_cast %48 : vector<1x4x72xf32> to vector<4x72xf32>
    %cst_28 = arith.constant dense<0.000000e+00> : vector<8x72xf32>
    %50 = tpu.matmul %47, %49, %cst_28 {dimension_numbers = #tpu.dot_dimension_numbers<[1], [0], [0], [1], [0, 0, 1, 1], [], []>} : vector<8x4xf32>, vector<4x72xf32>, vector<8x72xf32> -> vector<8x72xf32>
    %51 = arith.addf %43, %50 : vector<8x72xf32>
    %52 = vector.extract_strided_slice %11 {offsets = [3, 0], sizes = [1, 72], strides = [1, 1]} : vector<4x82xf32> to vector<1x72xf32>
    %53 = arith.addf %45, %52 : vector<1x72xf32>
    %c5 = arith.constant 5 : index
    %c0_29 = arith.constant 0 : index
    %c0_30 = arith.constant 0 : index
    %54 = vector.load %arg3[%c5, %c0_29, %c0_30] : memref<9x8x4xf32, #tpu.memory_space<vmem>>, vector<1x8x4xf32>
    %55 = vector.shape_cast %54 : vector<1x8x4xf32> to vector<8x4xf32>
    %56 = vector.extract_strided_slice %10 {offsets = [2, 0, 1], sizes = [1, 4, 72], strides = [1, 1, 1]} : vector<4x4x82xf32> to vector<1x4x72xf32>
    %57 = vector.shape_cast %56 : vector<1x4x72xf32> to vector<4x72xf32>
    %cst_31 = arith.constant dense<0.000000e+00> : vector<8x72xf32>
    %58 = tpu.matmul %55, %57, %cst_31 {dimension_numbers = #tpu.dot_dimension_numbers<[1], [0], [0], [1], [0, 0, 1, 1], [], []>} : vector<8x4xf32>, vector<4x72xf32>, vector<8x72xf32> -> vector<8x72xf32>
    %59 = arith.addf %51, %58 : vector<8x72xf32>
    %60 = vector.extract_strided_slice %11 {offsets = [2, 1], sizes = [1, 72], strides = [1, 1]} : vector<4x82xf32> to vector<1x72xf32>
    %61 = arith.addf %53, %60 : vector<1x72xf32>
    %c6 = arith.constant 6 : index
    %c0_32 = arith.constant 0 : index
    %c0_33 = arith.constant 0 : index
    %62 = vector.load %arg3[%c6, %c0_32, %c0_33] : memref<9x8x4xf32, #tpu.memory_space<vmem>>, vector<1x8x4xf32>
    %63 = vector.shape_cast %62 : vector<1x8x4xf32> to vector<8x4xf32>
    %64 = vector.extract_strided_slice %10 {offsets = [0, 0, 9], sizes = [1, 4, 72], strides = [1, 1, 1]} : vector<4x4x82xf32> to vector<1x4x72xf32>
    %65 = vector.shape_cast %64 : vector<1x4x72xf32> to vector<4x72xf32>
    %cst_34 = arith.constant dense<0.000000e+00> : vector<8x72xf32>
    %66 = tpu.matmul %63, %65, %cst_34 {dimension_numbers = #tpu.dot_dimension_numbers<[1], [0], [0], [1], [0, 0, 1, 1], [], []>} : vector<8x4xf32>, vector<4x72xf32>, vector<8x72xf32> -> vector<8x72xf32>
    %67 = arith.addf %59, %66 : vector<8x72xf32>
    %68 = vector.extract_strided_slice %11 {offsets = [0, 9], sizes = [1, 72], strides = [1, 1]} : vector<4x82xf32> to vector<1x72xf32>
    %69 = arith.addf %61, %68 : vector<1x72xf32>
    %c7 = arith.constant 7 : index
    %c0_35 = arith.constant 0 : index
    %c0_36 = arith.constant 0 : index
    %70 = vector.load %arg3[%c7, %c0_35, %c0_36] : memref<9x8x4xf32, #tpu.memory_space<vmem>>, vector<1x8x4xf32>
    %71 = vector.shape_cast %70 : vector<1x8x4xf32> to vector<8x4xf32>
    %72 = vector.extract_strided_slice %10 {offsets = [1, 0, 9], sizes = [1, 4, 72], strides = [1, 1, 1]} : vector<4x4x82xf32> to vector<1x4x72xf32>
    %73 = vector.shape_cast %72 : vector<1x4x72xf32> to vector<4x72xf32>
    %cst_37 = arith.constant dense<0.000000e+00> : vector<8x72xf32>
    %74 = tpu.matmul %71, %73, %cst_37 {dimension_numbers = #tpu.dot_dimension_numbers<[1], [0], [0], [1], [0, 0, 1, 1], [], []>} : vector<8x4xf32>, vector<4x72xf32>, vector<8x72xf32> -> vector<8x72xf32>
    %75 = arith.addf %67, %74 : vector<8x72xf32>
    %76 = vector.extract_strided_slice %11 {offsets = [1, 9], sizes = [1, 72], strides = [1, 1]} : vector<4x82xf32> to vector<1x72xf32>
    %77 = arith.addf %69, %76 : vector<1x72xf32>
    %c8 = arith.constant 8 : index
    %c0_38 = arith.constant 0 : index
    %c0_39 = arith.constant 0 : index
    %78 = vector.load %arg3[%c8, %c0_38, %c0_39] : memref<9x8x4xf32, #tpu.memory_space<vmem>>, vector<1x8x4xf32>
    %79 = vector.shape_cast %78 : vector<1x8x4xf32> to vector<8x4xf32>
    %80 = vector.extract_strided_slice %10 {offsets = [0, 0, 10], sizes = [1, 4, 72], strides = [1, 1, 1]} : vector<4x4x82xf32> to vector<1x4x72xf32>
    %81 = vector.shape_cast %80 : vector<1x4x72xf32> to vector<4x72xf32>
    %cst_40 = arith.constant dense<0.000000e+00> : vector<8x72xf32>
    %82 = tpu.matmul %79, %81, %cst_40 {dimension_numbers = #tpu.dot_dimension_numbers<[1], [0], [0], [1], [0, 0, 1, 1], [], []>} : vector<8x4xf32>, vector<4x72xf32>, vector<8x72xf32> -> vector<8x72xf32>
    %83 = arith.addf %75, %82 : vector<8x72xf32>
    %84 = vector.extract_strided_slice %11 {offsets = [0, 10], sizes = [1, 72], strides = [1, 1]} : vector<4x82xf32> to vector<1x72xf32>
    %85 = arith.addf %77, %84 : vector<1x72xf32>
    %cst_41 = arith.constant 1.000000e+00 : f32
    %86 = vector.broadcast %cst_41 : f32 to vector<1x72xf32>
    %87 = arith.mulf %85, %86 : vector<1x72xf32>
    %cst_42 = arith.constant 0.000000e+00 : f32
    %cst_43 = arith.constant 1.000000e+00 : f32
    %88 = vector.broadcast %cst_42 : f32 to vector<1x72xf32>
    %89 = arith.maximumf %88, %87 : vector<1x72xf32>
    %90 = vector.broadcast %cst_43 : f32 to vector<1x72xf32>
    %91 = arith.minimumf %90, %89 : vector<1x72xf32>
    %cst_44 = arith.constant 9.99999993E-9 : f32
    %92 = vector.broadcast %cst_44 : f32 to vector<1x72xf32>
    %93 = arith.addf %87, %92 : vector<1x72xf32>
    %cst_45 = arith.constant 3.600000e+01 : f32
    %94 = vector.broadcast %cst_45 : f32 to vector<1x72xf32>
    %95 = arith.divf %94, %93 : vector<1x72xf32>
    %96 = arith.mulf %95, %91 : vector<1x72xf32>
    %97 = vector.broadcast %96 : vector<1x72xf32> to vector<8x72xf32>
    %98 = arith.mulf %83, %97 : vector<8x72xf32>
    %c0_46 = arith.constant 0 : index
    %c0_47 = arith.constant 0 : index
    %99 = vector.load %arg4[%c0_46, %c0_47] : memref<8x1xf32, #tpu.memory_space<vmem>>, vector<8x1xf32>
    %100 = vector.broadcast %99 : vector<8x1xf32> to vector<8x72xf32>
    %101 = arith.addf %98, %100 : vector<8x72xf32>
    %102 = vector.broadcast %91 : vector<1x72xf32> to vector<8x72xf32>
    %103 = arith.mulf %101, %102 : vector<8x72xf32>
    %cst_48 = arith.constant 0.000000e+00 : f32
    %104 = vector.broadcast %cst_48 : f32 to vector<8x72xf32>
    %105 = arith.cmpf ogt, %103, %104 : vector<8x72xf32>
    %c0_49 = arith.constant 0 : index
    %c0_50 = arith.constant 0 : index
    %106 = vector.load %arg6[%c0_49, %c0_50] : memref<8x1xf32, #tpu.memory_space<vmem>>, vector<8x1xf32>
    %107 = vector.broadcast %106 : vector<8x1xf32> to vector<8x72xf32>
    %108 = arith.mulf %107, %103 : vector<8x72xf32>
    %109 = arith.select %105, %103, %108 : vector<8x72xi1>, vector<8x72xf32>
    %110 = vector.broadcast %91 : vector<1x72xf32> to vector<8x72xf32>
    %111 = arith.mulf %109, %110 : vector<8x72xf32>
    %112 = arith.truncf %111 : vector<8x72xf32> to vector<8x72xbf16>
    %c0_51 = arith.constant 0 : index
    %c0_52 = arith.constant 0 : index
    %c0_53 = arith.constant 0 : index
    %113 = vector.load %arg7[%c0_51, %c0_52, %c0_53] : memref<1x8x72xbf16, #tpu.memory_space<vmem>>, vector<1x8x72xbf16>
    %114 = vector.shape_cast %113 : vector<1x8x72xbf16> to vector<8x72xbf16>
    %115 = vector.shape_cast %112 : vector<8x72xbf16> to vector<1x8x72xbf16>
    tpu.vector_store %arg7[%c0_51, %c0_52, %c0_53], %115 {strides = array<i32>} : memref<1x8x72xbf16, #tpu.memory_space<vmem>>, vector<1x8x72xbf16>,
    %c0_54 = arith.constant 0 : index
    %c0_55 = arith.constant 0 : index
    %c0_56 = arith.constant 0 : index
    %116 = vector.load %arg8[%c0_54, %c0_55, %c0_56] : memref<1x1x72xf32, #tpu.memory_space<vmem>>, vector<1x1x72xf32>
    %117 = vector.shape_cast %116 : vector<1x1x72xf32> to vector<1x72xf32>
    %118 = vector.shape_cast %91 : vector<1x72xf32> to vector<1x1x72xf32>
    tpu.vector_store %arg8[%c0_54, %c0_55, %c0_56], %118 {strides = array<i32>} : memref<1x1x72xf32, #tpu.memory_space<vmem>>, vector<1x1x72xf32>,
    return
  }
  func.func @transform_0(%arg0: i32) -> (i32, i32, i32, i32) {
    %c0_i32 = arith.constant 0 : i32
    %c0_i32_0 = arith.constant 0 : i32
    %c0_i32_1 = arith.constant 0 : i32
    %c0_i32_2 = arith.constant 0 : i32
    return %arg0, %c0_i32, %c0_i32_0, %c0_i32_1 : i32, i32, i32, i32
  }
  func.func @transform_1(%arg0: i32) -> (i32, i32, i32, i32) {
    %c0_i32 = arith.constant 0 : i32
    %c0_i32_0 = arith.constant 0 : i32
    %c0_i32_1 = arith.constant 0 : i32
    %c0_i32_2 = arith.constant 0 : i32
    return %arg0, %c0_i32, %c0_i32_0, %c0_i32_1 : i32, i32, i32, i32
  }
  func.func @transform_2(%arg0: i32) -> (i32, i32, i32) {
    %c0_i32 = arith.constant 0 : i32
    %c0_i32_0 = arith.constant 0 : i32
    %c0_i32_1 = arith.constant 0 : i32
    %c0_i32_2 = arith.constant 0 : i32
    return %c0_i32, %c0_i32_0, %c0_i32_1 : i32, i32, i32
  }
  func.func @transform_3(%arg0: i32) -> (i32, i32) {
    %c0_i32 = arith.constant 0 : i32
    %c0_i32_0 = arith.constant 0 : i32
    %c0_i32_1 = arith.constant 0 : i32
    return %c0_i32, %c0_i32_0 : i32, i32
  }
  func.func @transform_4(%arg0: i32) -> (i32, i32, i32) {
    %c0_i32 = arith.constant 0 : i32
    %c0_i32_0 = arith.constant 0 : i32
    %c0_i32_1 = arith.constant 0 : i32
    %c0_i32_2 = arith.constant 0 : i32
    return %c0_i32, %c0_i32_0, %c0_i32_1 : i32, i32, i32
  }
  func.func @transform_5(%arg0: i32) -> (i32, i32) {
    %c0_i32 = arith.constant 0 : i32
    %c0_i32_0 = arith.constant 0 : i32
    %c0_i32_1 = arith.constant 0 : i32
    return %c0_i32, %c0_i32_0 : i32, i32
  }
  func.func @transform_6(%arg0: i32) -> (i32, i32, i32) {
    %c0_i32 = arith.constant 0 : i32
    %c0_i32_0 = arith.constant 0 : i32
    %c0_i32_1 = arith.constant 0 : i32
    return %arg0, %c0_i32, %c0_i32_0 : i32, i32, i32
  }
  func.func @transform_7(%arg0: i32) -> (i32, i32, i32) {
    %c0_i32 = arith.constant 0 : i32
    %c0_i32_0 = arith.constant 0 : i32
    %c0_i32_1 = arith.constant 0 : i32
    return %arg0, %c0_i32, %c0_i32_0 : i32, i32, i32
  }
}

module attributes {stable_mosaic.version = 11 : i64} {
  func.func @_pconv_kernel(%arg0: i32, %arg1: memref<1x1x8x102xbf16, #tpu.memory_space<vmem>>, %arg2: memref<1x1x1x102xf32, #tpu.memory_space<vmem>>, %arg3: memref<9x16x8xf32, #tpu.memory_space<vmem>>, %arg4: memref<16x1xf32, #tpu.memory_space<vmem>>, %arg5: memref<1x8x1xf32, #tpu.memory_space<vmem>>, %arg6: memref<16x1xf32, #tpu.memory_space<vmem>>, %arg7: memref<1x16x80xf32, #tpu.memory_space<vmem>>, %arg8: memref<1x1x80xf32, #tpu.memory_space<vmem>>) attributes {dimension_semantics = [#tpu.dimension_semantics<parallel>], iteration_bounds = array<i64: 2>, scalar_prefetch = 0 : i64, scratch_operands = 0 : i64, tpu.core_type = #tpu.core_type<tc>, window_params = [{transform_indices = @transform_0, window_bounds = array<i64: 1, 1, 8, 102>}, {transform_indices = @transform_1, window_bounds = array<i64: 1, 1, 1, 102>}, {pipeline_mode = #tpu.pipeline_mode<synchronous>, transform_indices = @transform_2, window_bounds = array<i64: 9, 16, 8>}, {pipeline_mode = #tpu.pipeline_mode<synchronous>, transform_indices = @transform_3, window_bounds = array<i64: 16, 1>}, {pipeline_mode = #tpu.pipeline_mode<synchronous>, transform_indices = @transform_4, window_bounds = array<i64: 1, 8, 1>}, {pipeline_mode = #tpu.pipeline_mode<synchronous>, transform_indices = @transform_5, window_bounds = array<i64: 16, 1>}, {transform_indices = @transform_6, window_bounds = array<i64: 1, 16, 80>}, {transform_indices = @transform_7, window_bounds = array<i64: 1, 1, 80>}]} {
    %c0 = arith.constant 0 : index
    %c0_0 = arith.constant 0 : index
    %c0_1 = arith.constant 0 : index
    %c0_2 = arith.constant 0 : index
    %0 = vector.load %arg1[%c0, %c0_0, %c0_1, %c0_2] : memref<1x1x8x102xbf16, #tpu.memory_space<vmem>>, vector<1x1x8x102xbf16>
    %1 = vector.shape_cast %0 : vector<1x1x8x102xbf16> to vector<1x8x102xbf16>
    %2 = arith.extf %1 : vector<1x8x102xbf16> to vector<1x8x102xf32>
    %c0_3 = arith.constant 0 : index
    %c0_4 = arith.constant 0 : index
    %c0_5 = arith.constant 0 : index
    %c0_6 = arith.constant 0 : index
    %3 = vector.load %arg2[%c0_3, %c0_4, %c0_5, %c0_6] : memref<1x1x1x102xf32, #tpu.memory_space<vmem>>, vector<1x1x1x102xf32>
    %4 = vector.shape_cast %3 : vector<1x1x1x102xf32> to vector<1x1x102xf32>
    %cst = arith.constant dense<0.000000e+00> : vector<1x102xf32>
    %5 = vector.multi_reduction <add>, %4, %cst [1] : vector<1x1x102xf32> to vector<1x102xf32>
    %cst_7 = arith.constant 0.000000e+00 : f32
    %6 = vector.broadcast %cst_7 : f32 to vector<16x80xf32>
    %cst_8 = arith.constant 0.000000e+00 : f32
    %7 = vector.broadcast %cst_8 : f32 to vector<1x80xf32>
    %c0_9 = arith.constant 0 : index
    %c0_10 = arith.constant 0 : index
    %c0_11 = arith.constant 0 : index
    %8 = vector.load %arg3[%c0_9, %c0_10, %c0_11] : memref<9x16x8xf32, #tpu.memory_space<vmem>>, vector<1x16x8xf32>
    %9 = vector.shape_cast %8 : vector<1x16x8xf32> to vector<16x8xf32>
    %10 = vector.extract_strided_slice %2 {offsets = [0, 0, 0], sizes = [1, 8, 80], strides = [1, 1, 1]} : vector<1x8x102xf32> to vector<1x8x80xf32>
    %11 = vector.shape_cast %10 : vector<1x8x80xf32> to vector<8x80xf32>
    %cst_12 = arith.constant dense<0.000000e+00> : vector<16x80xf32>
    %12 = tpu.matmul %9, %11, %cst_12 {dimension_numbers = #tpu.dot_dimension_numbers<[1], [0], [0], [1], [0, 0, 1, 1], [], []>} : vector<16x8xf32>, vector<8x80xf32>, vector<16x80xf32> -> vector<16x80xf32>
    %13 = arith.addf %6, %12 : vector<16x80xf32>
    %14 = vector.extract_strided_slice %5 {offsets = [0, 0], sizes = [1, 80], strides = [1, 1]} : vector<1x102xf32> to vector<1x80xf32>
    %15 = arith.addf %7, %14 : vector<1x80xf32>
    %c1 = arith.constant 1 : index
    %c0_13 = arith.constant 0 : index
    %c0_14 = arith.constant 0 : index
    %16 = vector.load %arg3[%c1, %c0_13, %c0_14] : memref<9x16x8xf32, #tpu.memory_space<vmem>>, vector<1x16x8xf32>
    %17 = vector.shape_cast %16 : vector<1x16x8xf32> to vector<16x8xf32>
    %18 = vector.extract_strided_slice %2 {offsets = [0, 0, 1], sizes = [1, 8, 80], strides = [1, 1, 1]} : vector<1x8x102xf32> to vector<1x8x80xf32>
    %19 = vector.shape_cast %18 : vector<1x8x80xf32> to vector<8x80xf32>
    %cst_15 = arith.constant dense<0.000000e+00> : vector<16x80xf32>
    %20 = tpu.matmul %17, %19, %cst_15 {dimension_numbers = #tpu.dot_dimension_numbers<[1], [0], [0], [1], [0, 0, 1, 1], [], []>} : vector<16x8xf32>, vector<8x80xf32>, vector<16x80xf32> -> vector<16x80xf32>
    %21 = arith.addf %13, %20 : vector<16x80xf32>
    %22 = vector.extract_strided_slice %5 {offsets = [0, 1], sizes = [1, 80], strides = [1, 1]} : vector<1x102xf32> to vector<1x80xf32>
    %23 = arith.addf %15, %22 : vector<1x80xf32>
    %c2 = arith.constant 2 : index
    %c0_16 = arith.constant 0 : index
    %c0_17 = arith.constant 0 : index
    %24 = vector.load %arg3[%c2, %c0_16, %c0_17] : memref<9x16x8xf32, #tpu.memory_space<vmem>>, vector<1x16x8xf32>
    %25 = vector.shape_cast %24 : vector<1x16x8xf32> to vector<16x8xf32>
    %26 = vector.extract_strided_slice %2 {offsets = [0, 0, 2], sizes = [1, 8, 80], strides = [1, 1, 1]} : vector<1x8x102xf32> to vector<1x8x80xf32>
    %27 = vector.shape_cast %26 : vector<1x8x80xf32> to vector<8x80xf32>
    %cst_18 = arith.constant dense<0.000000e+00> : vector<16x80xf32>
    %28 = tpu.matmul %25, %27, %cst_18 {dimension_numbers = #tpu.dot_dimension_numbers<[1], [0], [0], [1], [0, 0, 1, 1], [], []>} : vector<16x8xf32>, vector<8x80xf32>, vector<16x80xf32> -> vector<16x80xf32>
    %29 = arith.addf %21, %28 : vector<16x80xf32>
    %30 = vector.extract_strided_slice %5 {offsets = [0, 2], sizes = [1, 80], strides = [1, 1]} : vector<1x102xf32> to vector<1x80xf32>
    %31 = arith.addf %23, %30 : vector<1x80xf32>
    %c3 = arith.constant 3 : index
    %c0_19 = arith.constant 0 : index
    %c0_20 = arith.constant 0 : index
    %32 = vector.load %arg3[%c3, %c0_19, %c0_20] : memref<9x16x8xf32, #tpu.memory_space<vmem>>, vector<1x16x8xf32>
    %33 = vector.shape_cast %32 : vector<1x16x8xf32> to vector<16x8xf32>
    %34 = vector.extract_strided_slice %2 {offsets = [0, 0, 10], sizes = [1, 8, 80], strides = [1, 1, 1]} : vector<1x8x102xf32> to vector<1x8x80xf32>
    %35 = vector.shape_cast %34 : vector<1x8x80xf32> to vector<8x80xf32>
    %cst_21 = arith.constant dense<0.000000e+00> : vector<16x80xf32>
    %36 = tpu.matmul %33, %35, %cst_21 {dimension_numbers = #tpu.dot_dimension_numbers<[1], [0], [0], [1], [0, 0, 1, 1], [], []>} : vector<16x8xf32>, vector<8x80xf32>, vector<16x80xf32> -> vector<16x80xf32>
    %37 = arith.addf %29, %36 : vector<16x80xf32>
    %38 = vector.extract_strided_slice %5 {offsets = [0, 10], sizes = [1, 80], strides = [1, 1]} : vector<1x102xf32> to vector<1x80xf32>
    %39 = arith.addf %31, %38 : vector<1x80xf32>
    %c4 = arith.constant 4 : index
    %c0_22 = arith.constant 0 : index
    %c0_23 = arith.constant 0 : index
    %40 = vector.load %arg3[%c4, %c0_22, %c0_23] : memref<9x16x8xf32, #tpu.memory_space<vmem>>, vector<1x16x8xf32>
    %41 = vector.shape_cast %40 : vector<1x16x8xf32> to vector<16x8xf32>
    %42 = vector.extract_strided_slice %2 {offsets = [0, 0, 11], sizes = [1, 8, 80], strides = [1, 1, 1]} : vector<1x8x102xf32> to vector<1x8x80xf32>
    %43 = vector.shape_cast %42 : vector<1x8x80xf32> to vector<8x80xf32>
    %cst_24 = arith.constant dense<0.000000e+00> : vector<16x80xf32>
    %44 = tpu.matmul %41, %43, %cst_24 {dimension_numbers = #tpu.dot_dimension_numbers<[1], [0], [0], [1], [0, 0, 1, 1], [], []>} : vector<16x8xf32>, vector<8x80xf32>, vector<16x80xf32> -> vector<16x80xf32>
    %45 = arith.addf %37, %44 : vector<16x80xf32>
    %46 = vector.extract_strided_slice %5 {offsets = [0, 11], sizes = [1, 80], strides = [1, 1]} : vector<1x102xf32> to vector<1x80xf32>
    %47 = arith.addf %39, %46 : vector<1x80xf32>
    %c5 = arith.constant 5 : index
    %c0_25 = arith.constant 0 : index
    %c0_26 = arith.constant 0 : index
    %48 = vector.load %arg3[%c5, %c0_25, %c0_26] : memref<9x16x8xf32, #tpu.memory_space<vmem>>, vector<1x16x8xf32>
    %49 = vector.shape_cast %48 : vector<1x16x8xf32> to vector<16x8xf32>
    %50 = vector.extract_strided_slice %2 {offsets = [0, 0, 12], sizes = [1, 8, 80], strides = [1, 1, 1]} : vector<1x8x102xf32> to vector<1x8x80xf32>
    %51 = vector.shape_cast %50 : vector<1x8x80xf32> to vector<8x80xf32>
    %cst_27 = arith.constant dense<0.000000e+00> : vector<16x80xf32>
    %52 = tpu.matmul %49, %51, %cst_27 {dimension_numbers = #tpu.dot_dimension_numbers<[1], [0], [0], [1], [0, 0, 1, 1], [], []>} : vector<16x8xf32>, vector<8x80xf32>, vector<16x80xf32> -> vector<16x80xf32>
    %53 = arith.addf %45, %52 : vector<16x80xf32>
    %54 = vector.extract_strided_slice %5 {offsets = [0, 12], sizes = [1, 80], strides = [1, 1]} : vector<1x102xf32> to vector<1x80xf32>
    %55 = arith.addf %47, %54 : vector<1x80xf32>
    %c6 = arith.constant 6 : index
    %c0_28 = arith.constant 0 : index
    %c0_29 = arith.constant 0 : index
    %56 = vector.load %arg3[%c6, %c0_28, %c0_29] : memref<9x16x8xf32, #tpu.memory_space<vmem>>, vector<1x16x8xf32>
    %57 = vector.shape_cast %56 : vector<1x16x8xf32> to vector<16x8xf32>
    %58 = vector.extract_strided_slice %2 {offsets = [0, 0, 20], sizes = [1, 8, 80], strides = [1, 1, 1]} : vector<1x8x102xf32> to vector<1x8x80xf32>
    %59 = vector.shape_cast %58 : vector<1x8x80xf32> to vector<8x80xf32>
    %cst_30 = arith.constant dense<0.000000e+00> : vector<16x80xf32>
    %60 = tpu.matmul %57, %59, %cst_30 {dimension_numbers = #tpu.dot_dimension_numbers<[1], [0], [0], [1], [0, 0, 1, 1], [], []>} : vector<16x8xf32>, vector<8x80xf32>, vector<16x80xf32> -> vector<16x80xf32>
    %61 = arith.addf %53, %60 : vector<16x80xf32>
    %62 = vector.extract_strided_slice %5 {offsets = [0, 20], sizes = [1, 80], strides = [1, 1]} : vector<1x102xf32> to vector<1x80xf32>
    %63 = arith.addf %55, %62 : vector<1x80xf32>
    %c7 = arith.constant 7 : index
    %c0_31 = arith.constant 0 : index
    %c0_32 = arith.constant 0 : index
    %64 = vector.load %arg3[%c7, %c0_31, %c0_32] : memref<9x16x8xf32, #tpu.memory_space<vmem>>, vector<1x16x8xf32>
    %65 = vector.shape_cast %64 : vector<1x16x8xf32> to vector<16x8xf32>
    %66 = vector.extract_strided_slice %2 {offsets = [0, 0, 21], sizes = [1, 8, 80], strides = [1, 1, 1]} : vector<1x8x102xf32> to vector<1x8x80xf32>
    %67 = vector.shape_cast %66 : vector<1x8x80xf32> to vector<8x80xf32>
    %cst_33 = arith.constant dense<0.000000e+00> : vector<16x80xf32>
    %68 = tpu.matmul %65, %67, %cst_33 {dimension_numbers = #tpu.dot_dimension_numbers<[1], [0], [0], [1], [0, 0, 1, 1], [], []>} : vector<16x8xf32>, vector<8x80xf32>, vector<16x80xf32> -> vector<16x80xf32>
    %69 = arith.addf %61, %68 : vector<16x80xf32>
    %70 = vector.extract_strided_slice %5 {offsets = [0, 21], sizes = [1, 80], strides = [1, 1]} : vector<1x102xf32> to vector<1x80xf32>
    %71 = arith.addf %63, %70 : vector<1x80xf32>
    %c8 = arith.constant 8 : index
    %c0_34 = arith.constant 0 : index
    %c0_35 = arith.constant 0 : index
    %72 = vector.load %arg3[%c8, %c0_34, %c0_35] : memref<9x16x8xf32, #tpu.memory_space<vmem>>, vector<1x16x8xf32>
    %73 = vector.shape_cast %72 : vector<1x16x8xf32> to vector<16x8xf32>
    %74 = vector.extract_strided_slice %2 {offsets = [0, 0, 22], sizes = [1, 8, 80], strides = [1, 1, 1]} : vector<1x8x102xf32> to vector<1x8x80xf32>
    %75 = vector.shape_cast %74 : vector<1x8x80xf32> to vector<8x80xf32>
    %cst_36 = arith.constant dense<0.000000e+00> : vector<16x80xf32>
    %76 = tpu.matmul %73, %75, %cst_36 {dimension_numbers = #tpu.dot_dimension_numbers<[1], [0], [0], [1], [0, 0, 1, 1], [], []>} : vector<16x8xf32>, vector<8x80xf32>, vector<16x80xf32> -> vector<16x80xf32>
    %77 = arith.addf %69, %76 : vector<16x80xf32>
    %78 = vector.extract_strided_slice %5 {offsets = [0, 22], sizes = [1, 80], strides = [1, 1]} : vector<1x102xf32> to vector<1x80xf32>
    %79 = arith.addf %71, %78 : vector<1x80xf32>
    %cst_37 = arith.constant 8.000000e+00 : f32
    %80 = vector.broadcast %cst_37 : f32 to vector<1x80xf32>
    %81 = arith.mulf %79, %80 : vector<1x80xf32>
    %cst_38 = arith.constant 0.000000e+00 : f32
    %cst_39 = arith.constant 1.000000e+00 : f32
    %82 = vector.broadcast %cst_38 : f32 to vector<1x80xf32>
    %83 = arith.maximumf %82, %81 : vector<1x80xf32>
    %84 = vector.broadcast %cst_39 : f32 to vector<1x80xf32>
    %85 = arith.minimumf %84, %83 : vector<1x80xf32>
    %cst_40 = arith.constant 9.99999993E-9 : f32
    %86 = vector.broadcast %cst_40 : f32 to vector<1x80xf32>
    %87 = arith.addf %81, %86 : vector<1x80xf32>
    %cst_41 = arith.constant 7.200000e+01 : f32
    %88 = vector.broadcast %cst_41 : f32 to vector<1x80xf32>
    %89 = arith.divf %88, %87 : vector<1x80xf32>
    %90 = arith.mulf %89, %85 : vector<1x80xf32>
    %91 = vector.broadcast %90 : vector<1x80xf32> to vector<16x80xf32>
    %92 = arith.mulf %77, %91 : vector<16x80xf32>
    %c0_42 = arith.constant 0 : index
    %c0_43 = arith.constant 0 : index
    %93 = vector.load %arg4[%c0_42, %c0_43] : memref<16x1xf32, #tpu.memory_space<vmem>>, vector<16x1xf32>
    %94 = vector.broadcast %93 : vector<16x1xf32> to vector<16x80xf32>
    %95 = arith.addf %92, %94 : vector<16x80xf32>
    %96 = vector.broadcast %85 : vector<1x80xf32> to vector<16x80xf32>
    %97 = arith.mulf %95, %96 : vector<16x80xf32>
    %c0_44 = arith.constant 0 : index
    %c0_45 = arith.constant 0 : index
    %c0_46 = arith.constant 0 : index
    %98 = vector.load %arg7[%c0_44, %c0_45, %c0_46] : memref<1x16x80xf32, #tpu.memory_space<vmem>>, vector<1x16x80xf32>
    %99 = vector.shape_cast %98 : vector<1x16x80xf32> to vector<16x80xf32>
    %100 = vector.shape_cast %97 : vector<16x80xf32> to vector<1x16x80xf32>
    tpu.vector_store %arg7[%c0_44, %c0_45, %c0_46], %100 {strides = array<i32>} : memref<1x16x80xf32, #tpu.memory_space<vmem>>, vector<1x16x80xf32>,
    %c0_47 = arith.constant 0 : index
    %c0_48 = arith.constant 0 : index
    %c0_49 = arith.constant 0 : index
    %101 = vector.load %arg8[%c0_47, %c0_48, %c0_49] : memref<1x1x80xf32, #tpu.memory_space<vmem>>, vector<1x1x80xf32>
    %102 = vector.shape_cast %101 : vector<1x1x80xf32> to vector<1x80xf32>
    %103 = vector.shape_cast %85 : vector<1x80xf32> to vector<1x1x80xf32>
    tpu.vector_store %arg8[%c0_47, %c0_48, %c0_49], %103 {strides = array<i32>} : memref<1x1x80xf32, #tpu.memory_space<vmem>>, vector<1x1x80xf32>,
    return
  }
  func.func @transform_0(%arg0: i32) -> (i32, i32, i32, i32) {
    %c0_i32 = arith.constant 0 : i32
    %c0_i32_0 = arith.constant 0 : i32
    %c0_i32_1 = arith.constant 0 : i32
    %c0_i32_2 = arith.constant 0 : i32
    return %arg0, %c0_i32, %c0_i32_0, %c0_i32_1 : i32, i32, i32, i32
  }
  func.func @transform_1(%arg0: i32) -> (i32, i32, i32, i32) {
    %c0_i32 = arith.constant 0 : i32
    %c0_i32_0 = arith.constant 0 : i32
    %c0_i32_1 = arith.constant 0 : i32
    %c0_i32_2 = arith.constant 0 : i32
    return %arg0, %c0_i32, %c0_i32_0, %c0_i32_1 : i32, i32, i32, i32
  }
  func.func @transform_2(%arg0: i32) -> (i32, i32, i32) {
    %c0_i32 = arith.constant 0 : i32
    %c0_i32_0 = arith.constant 0 : i32
    %c0_i32_1 = arith.constant 0 : i32
    %c0_i32_2 = arith.constant 0 : i32
    return %c0_i32, %c0_i32_0, %c0_i32_1 : i32, i32, i32
  }
  func.func @transform_3(%arg0: i32) -> (i32, i32) {
    %c0_i32 = arith.constant 0 : i32
    %c0_i32_0 = arith.constant 0 : i32
    %c0_i32_1 = arith.constant 0 : i32
    return %c0_i32, %c0_i32_0 : i32, i32
  }
  func.func @transform_4(%arg0: i32) -> (i32, i32, i32) {
    %c0_i32 = arith.constant 0 : i32
    %c0_i32_0 = arith.constant 0 : i32
    %c0_i32_1 = arith.constant 0 : i32
    %c0_i32_2 = arith.constant 0 : i32
    return %c0_i32, %c0_i32_0, %c0_i32_1 : i32, i32, i32
  }
  func.func @transform_5(%arg0: i32) -> (i32, i32) {
    %c0_i32 = arith.constant 0 : i32
    %c0_i32_0 = arith.constant 0 : i32
    %c0_i32_1 = arith.constant 0 : i32
    return %c0_i32, %c0_i32_0 : i32, i32
  }
  func.func @transform_6(%arg0: i32) -> (i32, i32, i32) {
    %c0_i32 = arith.constant 0 : i32
    %c0_i32_0 = arith.constant 0 : i32
    %c0_i32_1 = arith.constant 0 : i32
    return %arg0, %c0_i32, %c0_i32_0 : i32, i32, i32
  }
  func.func @transform_7(%arg0: i32) -> (i32, i32, i32) {
    %c0_i32 = arith.constant 0 : i32
    %c0_i32_0 = arith.constant 0 : i32
    %c0_i32_1 = arith.constant 0 : i32
    return %arg0, %c0_i32, %c0_i32_0 : i32, i32, i32
  }
}

</mosaic_0001>

<llo_original>
// kernel: downsample_forward.2
$region0: #{downsample_forward.2}
  #allocation0 [shape = 'u32[]', space=smem, size = 0x4, offset = 0x4, fixed_abs, tag = 'smem constant byte address 0x4 - core index']
  #allocation1 [shape = 'u32[144,128]{1,0:T(1,128)}', space=vmem, size = 0x12000, scoped, tag = 'internal scratch']
  %s0 = inlined_call_operand.vmem [shape: f32[2,4,4,82], index: 0, kind: input, shape index: {}]
  %s1 = inlined_call_operand.vmem [shape: f32[2,4,4,82], index: 1, kind: input, shape index: {}]
  %s2 = inlined_call_operand.vmem [shape: f32[9,8,4], index: 2, kind: input, shape index: {}]
  %s3 = inlined_call_operand.vmem [shape: f32[8,1], index: 3, kind: input, shape index: {}]
  %s4 = inlined_call_operand.vmem [shape: f32[1,4,1], index: 4, kind: input, shape index: {}]
  %s5 = inlined_call_operand.vmem [shape: f32[8,1], index: 5, kind: input, shape index: {}]
  %s6 = inlined_call_operand.vmem [shape: bf16[2,8,72], index: 6, kind: output, shape index: {0}]
  %s7 = inlined_call_operand.vmem [shape: f32[2,1,72], index: 7, kind: output, shape index: {1}]
  %8 = xla_tuple %s6, %s7
  %s9 = sld [smem:[#allocation0]]
  $region65: #{downsample_forward.2} parent=0
    _
  %s11 = ssub.s32 1, %s9
  %s12 = scalar_select 0, %s11, %s9
  loop: start=0, step=1, limit=4
  $region2: #{downsample_forward.2} parent=0 // loop_pre_header
    _
  $region3: #{downsample_forward.2} parent=0 // loop_header
    %s14 = sphi 0, %s18
    %p15 = scmp.ge.s32.totalorder %s14, 4
    %s24 = sphi 0, %s26
    %s27 = sphi 0, %s24
    %s28 = sphi 0, %s27
    %s44 = sphi 0, %s28
    %s50 = sphi 0, %s52
    %s53 = sphi 0, %s50
    %s54 = sphi 0, %s53
    %s70 = sphi 0, %s54
    %s74 = sphi 0, %s74
    %s76 = sphi 0, %s74
    %s77 = sphi 0, %s76
    %s91 = sphi 0, %s77
    %s95 = sphi 0, %s95
    %s97 = sphi 0, %s95
    %s98 = sphi 0, %s97
    %s112 = sphi 0, %s98
    %s116 = sphi 0, %s116
    %s118 = sphi 0, %s116
    %s119 = sphi 0, %s118
    %s133 = sphi 0, %s119
    %s137 = sphi 0, %s137
    %s139 = sphi 0, %s137
    %s140 = sphi 0, %s139
    %s154 = sphi 0, %s140
    %s160 = sphi 0, %s162
    %s163 = sphi 0, %s160
    %s164 = sphi 0, %s163
    %s180 = sphi 0, %s164
    %s186 = sphi 0, %s188
    %s189 = sphi 0, %s186
    %s190 = sphi 0, %s189
    %s206 = sphi 0, %s190
  $region4: #{downsample_forward.2} parent=0 // loop_header_branch
    %17 = sbr.rel (%p15) target = $region8
  $region5: #{downsample_forward.2} parent=0 // loop_body
    %s19 = ssub.s32 %s14, 1
    %s20 = ssub.s32 %s14, 2
    %s21 = sadd.s32 %s14, 1
    %s22 = ssub.s32 %s14, %s21
    %p23 = scmp.eq.s32.totalorder %s22, 0
    %s25 = sadd.s32 %s24, 1
    %s26 = scalar_select %p23, %s24, %s25
    %p29 = pneg %p23
    %p30 = scmp.eq.s32.totalorder %s14, 1
    %p31 = por %p29, %p30
    %p32 = scmp.ne.s32.totalorder %s24, %s27
    %p33 = scmp.eq.s32.totalorder %s14, 0
    %p34 = por %p32, %p33
    %p35 = scmp.ne.s32.totalorder %s24, %s27
    %p36 = scmp.eq.s32.totalorder %s19, 1
    %p37 = por %p35, %p36
    %p38 = scmp.ne.s32.totalorder %s27, %s28
    %p39 = scmp.eq.s32.totalorder %s19, 0
    %p40 = por %p38, %p39
    %p41 = scmp.ne.s32.totalorder %s27, %s28
    %p42 = scmp.eq.s32.totalorder %s20, 1
    %p43 = por %p41, %p42
    %p45 = scmp.ne.s32.totalorder %s28, %s44
    %p46 = scmp.eq.s32.totalorder %s20, 0
    %p47 = por %p45, %p46
    %s48 = ssub.s32 %s14, %s21
    %p49 = scmp.eq.s32.totalorder %s48, 0
    %s51 = sadd.s32 %s50, 1
    %s52 = scalar_select %p49, %s50, %s51
    %p55 = pneg %p49
    %p56 = scmp.eq.s32.totalorder %s14, 1
    %p57 = por %p55, %p56
    %p58 = scmp.ne.s32.totalorder %s50, %s53
    %p59 = scmp.eq.s32.totalorder %s14, 0
    %p60 = por %p58, %p59
    %p61 = scmp.ne.s32.totalorder %s50, %s53
    %p62 = scmp.eq.s32.totalorder %s19, 1
    %p63 = por %p61, %p62
    %p64 = scmp.ne.s32.totalorder %s53, %s54
    %p65 = scmp.eq.s32.totalorder %s19, 0
    %p66 = por %p64, %p65
    %p67 = scmp.ne.s32.totalorder %s53, %s54
    %p68 = scmp.eq.s32.totalorder %s20, 1
    %p69 = por %p67, %p68
    %p71 = scmp.ne.s32.totalorder %s54, %s70
    %p72 = scmp.eq.s32.totalorder %s20, 0
    %p73 = por %p71, %p72
    %s75 = sadd.s32 %s74, 1
    %p78 = scmp.eq.s32.totalorder %s14, 1
    %p79 = scmp.ne.s32.totalorder %s74, %s76
    %p80 = scmp.eq.s32.totalorder %s14, 0
    %p81 = por %p79, %p80
    %p82 = scmp.ne.s32.totalorder %s74, %s76
    %p83 = scmp.eq.s32.totalorder %s19, 1
    %p84 = por %p82, %p83
    %p85 = scmp.ne.s32.totalorder %s76, %s77
    %p86 = scmp.eq.s32.totalorder %s19, 0
    %p87 = por %p85, %p86
    %p88 = scmp.ne.s32.totalorder %s76, %s77
    %p89 = scmp.eq.s32.totalorder %s20, 1
    %p90 = por %p88, %p89
    %p92 = scmp.ne.s32.totalorder %s77, %s91
    %p93 = scmp.eq.s32.totalorder %s20, 0
    %p94 = por %p92, %p93
    %s96 = sadd.s32 %s95, 1
    %p99 = scmp.eq.s32.totalorder %s14, 1
    %p100 = scmp.ne.s32.totalorder %s95, %s97
    %p101 = scmp.eq.s32.totalorder %s14, 0
    %p102 = por %p100, %p101
    %p103 = scmp.ne.s32.totalorder %s95, %s97
    %p104 = scmp.eq.s32.totalorder %s19, 1
    %p105 = por %p103, %p104
    %p106 = scmp.ne.s32.totalorder %s97, %s98
    %p107 = scmp.eq.s32.totalorder %s19, 0
    %p108 = por %p106, %p107
    %p109 = scmp.ne.s32.totalorder %s97, %s98
    %p110 = scmp.eq.s32.totalorder %s20, 1
    %p111 = por %p109, %p110
    %p113 = scmp.ne.s32.totalorder %s98, %s112
    %p114 = scmp.eq.s32.totalorder %s20, 0
    %p115 = por %p113, %p114
    %s117 = sadd.s32 %s116, 1
    %p120 = scmp.eq.s32.totalorder %s14, 1
    %p121 = scmp.ne.s32.totalorder %s116, %s118
    %p122 = scmp.eq.s32.totalorder %s14, 0
    %p123 = por %p121, %p122
    %p124 = scmp.ne.s32.totalorder %s116, %s118
    %p125 = scmp.eq.s32.totalorder %s19, 1
    %p126 = por %p124, %p125
    %p127 = scmp.ne.s32.totalorder %s118, %s119
    %p128 = scmp.eq.s32.totalorder %s19, 0
    %p129 = por %p127, %p128
    %p130 = scmp.ne.s32.totalorder %s118, %s119
    %p131 = scmp.eq.s32.totalorder %s20, 1
    %p132 = por %p130, %p131
    %p134 = scmp.ne.s32.totalorder %s119, %s133
    %p135 = scmp.eq.s32.totalorder %s20, 0
    %p136 = por %p134, %p135
    %s138 = sadd.s32 %s137, 1
    %p141 = scmp.eq.s32.totalorder %s14, 1
    %p142 = scmp.ne.s32.totalorder %s137, %s139
    %p143 = scmp.eq.s32.totalorder %s14, 0
    %p144 = por %p142, %p143
    %p145 = scmp.ne.s32.totalorder %s137, %s139
    %p146 = scmp.eq.s32.totalorder %s19, 1
    %p147 = por %p145, %p146
    %p148 = scmp.ne.s32.totalorder %s139, %s140
    %p149 = scmp.eq.s32.totalorder %s19, 0
    %p150 = por %p148, %p149
    %p151 = scmp.ne.s32.totalorder %s139, %s140
    %p152 = scmp.eq.s32.totalorder %s20, 1
    %p153 = por %p151, %p152
    %p155 = scmp.ne.s32.totalorder %s140, %s154
    %p156 = scmp.eq.s32.totalorder %s20, 0
    %p157 = por %p155, %p156
    %s158 = ssub.s32 %s14, %s21
    %p159 = scmp.eq.s32.totalorder %s158, 0
    %s161 = sadd.s32 %s160, 1
    %s162 = scalar_select %p159, %s160, %s161
    %p165 = pneg %p159
    %p166 = scmp.eq.s32.totalorder %s14, 1
    %p167 = por %p165, %p166
    %p168 = scmp.ne.s32.totalorder %s160, %s163
    %p169 = scmp.eq.s32.totalorder %s14, 0
    %p170 = por %p168, %p169
    %p171 = scmp.ne.s32.totalorder %s160, %s163
    %p172 = scmp.eq.s32.totalorder %s19, 1
    %p173 = por %p171, %p172
    %p174 = scmp.ne.s32.totalorder %s163, %s164
    %p175 = scmp.eq.s32.totalorder %s19, 0
    %p176 = por %p174, %p175
    %p177 = scmp.ne.s32.totalorder %s163, %s164
    %p178 = scmp.eq.s32.totalorder %s20, 1
    %p179 = por %p177, %p178
    %p181 = scmp.ne.s32.totalorder %s164, %s180
    %p182 = scmp.eq.s32.totalorder %s20, 0
    %p183 = por %p181, %p182
    %s184 = ssub.s32 %s14, %s21
    %p185 = scmp.eq.s32.totalorder %s184, 0
    %s187 = sadd.s32 %s186, 1
    %s188 = scalar_select %p185, %s186, %s187
    %p191 = pneg %p185
    %p192 = scmp.eq.s32.totalorder %s14, 1
    %p193 = por %p191, %p192
    %p194 = scmp.ne.s32.totalorder %s186, %s189
    %p195 = scmp.eq.s32.totalorder %s14, 0
    %p196 = por %p194, %p195
    %p197 = scmp.ne.s32.totalorder %s186, %s189
    %p198 = scmp.eq.s32.totalorder %s19, 1
    %p199 = por %p197, %p198
    %p200 = scmp.ne.s32.totalorder %s189, %s190
    %p201 = scmp.eq.s32.totalorder %s19, 0
    %p202 = por %p200, %p201
    %p203 = scmp.ne.s32.totalorder %s189, %s190
    %p204 = scmp.eq.s32.totalorder %s20, 1
    %p205 = por %p203, %p204
    %p207 = scmp.ne.s32.totalorder %s190, %s206
    %p208 = scmp.eq.s32.totalorder %s20, 0
    %p209 = por %p207, %p208
    %p210 = scmp.le.s32.totalorder 1, %s14
    %p211 = scmp.lt.s32.totalorder %s14, 3
    %p212 = pnand %p210, %p211
    %p213 = pneg %p212
    // Predicated region
    $region9: #{downsample_forward.2} parent=5 // pred_check
      _
    $region10: #{downsample_forward.2} parent=5 // pred_check_branch
      %215 = sbr.rel (%p212) target = $region12
    $region11: #{downsample_forward.2} parent=5 // pred_region
      %s216 = ssub.s32 %s14, 1
      // Predicated region
      $region13: #{downsample_forward.2} parent=11 // pred_check
        %p217 = pneg %p87
      $region14: #{downsample_forward.2} parent=11 // pred_check_branch
        %219 = sbr.rel (%p217) target = $region16
      $region15: #{downsample_forward.2} parent=11 // pred_region
        _
      $region16: #{downsample_forward.2} parent=11 // pred_fallthru
        _
      // Predicated region
      $region17: #{downsample_forward.2} parent=11 // pred_check
        %p220 = pneg %p108
      $region18: #{downsample_forward.2} parent=11 // pred_check_branch
        %222 = sbr.rel (%p220) target = $region20
      $region19: #{downsample_forward.2} parent=11 // pred_region
        _
      $region20: #{downsample_forward.2} parent=11 // pred_fallthru
        _
      // Predicated region
      $region21: #{downsample_forward.2} parent=11 // pred_check
        %p223 = pneg %p129
      $region22: #{downsample_forward.2} parent=11 // pred_check_branch
        %225 = sbr.rel (%p223) target = $region24
      $region23: #{downsample_forward.2} parent=11 // pred_region
        _
      $region24: #{downsample_forward.2} parent=11 // pred_fallthru
        _
      // Predicated region
      $region25: #{downsample_forward.2} parent=11 // pred_check
        %p226 = pneg %p150
      $region26: #{downsample_forward.2} parent=11 // pred_check_branch
        %228 = sbr.rel (%p226) target = $region28
      $region27: #{downsample_forward.2} parent=11 // pred_region
        _
      $region28: #{downsample_forward.2} parent=11 // pred_fallthru
        _
    $region12: #{downsample_forward.2} parent=5 // pred_fallthru
      _
    %p229 = scmp.lt.s32.totalorder %s14, 2
    // Predicated region
    $region29: #{downsample_forward.2} parent=5 // pred_check
      %p230 = pneg %p229
    $region30: #{downsample_forward.2} parent=5 // pred_check_branch
      %232 = sbr.rel (%p230) target = $region32
    $region31: #{downsample_forward.2} parent=5 // pred_region
      // Predicated region
      $region33: #{downsample_forward.2} parent=31 // pred_check
        %p233 = pneg %p34
      $region34: #{downsample_forward.2} parent=31 // pred_check_branch
        %235 = sbr.rel (%p233) target = $region36
      $region35: #{downsample_forward.2} parent=31 // pred_region
        %p236 = scmp.lt.s32.totalorder %s14, 1
        %s237 = scalar_select %p236, %s14, 1
        %s238 = smul.addr %s237, 4
        %s239 = smul.addr %s238, 4
        %s240 = scalar_lea.vmem %s0, %s239
      $region36: #{downsample_forward.2} parent=31 // pred_fallthru
        _
      // Predicated region
      $region37: #{downsample_forward.2} parent=31 // pred_check
        %p241 = pneg %p60
      $region38: #{downsample_forward.2} parent=31 // pred_check_branch
        %243 = sbr.rel (%p241) target = $region40
      $region39: #{downsample_forward.2} parent=31 // pred_region
        %p244 = scmp.lt.s32.totalorder %s14, 1
        %s245 = scalar_select %p244, %s14, 1
        %s246 = smul.addr %s245, 4
        %s247 = smul.addr %s246, 4
        %s248 = scalar_lea.vmem %s1, %s247
      $region40: #{downsample_forward.2} parent=31 // pred_fallthru
        _
    $region32: #{downsample_forward.2} parent=5 // pred_fallthru
      _
    %p249 = scmp.le.s32.totalorder 1, %s14
    %p250 = scmp.lt.s32.totalorder %s14, 3
    %p251 = pnand %p249, %p250
    %p252 = pneg %p251
    // Predicated region
    $region41: #{downsample_forward.2} parent=5 // pred_check
      _
    $region42: #{downsample_forward.2} parent=5 // pred_check_branch
      %254 = sbr.rel (%p251) target = $region44
    $region43: #{downsample_forward.2} parent=5 // pred_region
      %s255 = ssub.s32 %s14, 1
      %p256 = scmp.lt.s32.totalorder %s19, 1
      %s257 = scalar_select %p256, %s19, 1
      %s258 = smul.addr %s257, 4
      %s259 = smul.addr %s258, 4
      %s260 = scalar_lea.vmem %s0, %s259
      %p261 = pneg %p40
      %p262 = pneg %p37
      %p263 = scmp.lt.s32.totalorder %s19, 1
      %s264 = scalar_select %p263, %s19, 1
      %s265 = smul.addr %s264, 4
      %s266 = smul.addr %s265, 4
      %s267 = scalar_lea.vmem %s1, %s266
      %p268 = pneg %p66
      %p269 = pneg %p63
      %p270 = pneg %p87
      %p271 = pneg %p84
      %p272 = pneg %p108
      %p273 = pneg %p105
      %p274 = pneg %p129
      %p275 = pneg %p126
      %p276 = pneg %p150
      %p277 = pneg %p147
      %p278 = pneg %p176
      %p279 = pneg %p173
      %p280 = scmp.lt.s32.totalorder %s19, 1
      %s281 = scalar_select %p280, %s19, 1
      %s282 = smul.addr %s281, 4
      %s283 = scalar_lea.vmem %s6, %s282
      %p284 = pneg %p202
      %p285 = pneg %p199
      %p286 = scmp.lt.s32.totalorder %s19, 1
      %s287 = scalar_select %p286, %s19, 1
      %s288 = scalar_lea.vmem %s7, %s287
      %p289 = scmp.lt.s32.totalorder %s19, 1
      %s290 = scalar_select %p289, %s19, 1
      %s291 = smul.addr %s290, 4
      %s292 = smul.addr %s291, 4
      %s293 = scalar_lea.vmem %s0, %s292
      %p294 = scmp.lt.s32.totalorder %s19, 1
      %s295 = scalar_select %p294, %s19, 1
      %s296 = smul.addr %s295, 4
      %s297 = smul.addr %s296, 4
      %s298 = scalar_lea.vmem %s1, %s297
      %p299 = scmp.lt.s32.totalorder %s19, 1
      %s300 = scalar_select %p299, %s19, 1
      %s301 = smul.addr %s300, 4
      %s302 = scalar_lea.vmem %s6, %s301
      %p303 = scmp.lt.s32.totalorder %s19, 1
      %s304 = scalar_select %p303, %s19, 1
      %s305 = scalar_lea.vmem %s7, %s304
      %v306 = vld [vmem:[%s293] sm:$0xf]
      %v307 = vld [vmem:[%s293 + $0x4] sm:$0xf]
      %v308 = vld [vmem:[%s293 + $0x8] sm:$0xf]
      %v309 = vld [vmem:[%s293 + $0xc] sm:$0xf]
      %v310 = vld [vmem:[%s298] sm:$0xf]
      %v311 = vld [vmem:[%s298 + $0x4] sm:$0xf]
      %v312 = vld [vmem:[%s298 + $0x8] sm:$0xf]
      %v313 = vld [vmem:[%s298 + $0xc] sm:$0xf]
      %v314 = vld [vmem:[%s4] sm:$0xf]
      %vm315 = vcmp.gt.f32.partialorder %v306, 0.0
      %vm316 = vcmp.gt.f32.partialorder %v307, 0.0
      %vm317 = vcmp.gt.f32.partialorder %v308, 0.0
      %vm318 = vcmp.gt.f32.partialorder %v309, 0.0
      %320 = vset.pattern.permute.xlu0 0
      %321 = vperm.xlu0 %320, %v314
      %v322 = vpop.permute.xlu0 %321
      %v324 = vmul.f32 %v322, %v306
      %v325 = vmul.f32 %v322, %v307
      %v326 = vmul.f32 %v322, %v308
      %v327 = vmul.f32 %v322, %v309
      %v328 = vsel %vm315, %v306, %v324
      %v329 = vsel %vm316, %v307, %v325
      %v330 = vsel %vm317, %v308, %v326
      %v331 = vsel %vm318, %v309, %v327
      %v332 = vmul.f32 %v328, %v310
      %v333 = vmul.f32 %v329, %v311
      %v334 = vmul.f32 %v330, %v312
      %v335 = vmul.f32 %v331, %v313
      %vm336 = vcmask 666624
      %v337 = vsel %vm336, %v310, 0.0
      %v338 = vrot.slane %v337, 4
      %v339 = vadd.f32 %v337, %v338
      %v340 = vrot.slane %v339, 2
      %v341 = vadd.f32 %v339, %v340
      %v342 = vrot.slane %v341, 1
      %v343 = vadd.f32 %v341, %v342
      %v344 = vsel %vm336, %v311, 0.0
      %v345 = vrot.slane %v344, 4
      %v346 = vadd.f32 %v344, %v345
      %v347 = vrot.slane %v346, 2
      %v348 = vadd.f32 %v346, %v347
      %v349 = vrot.slane %v348, 1
      %v350 = vadd.f32 %v348, %v349
      %v351 = vsel %vm336, %v312, 0.0
      %v352 = vrot.slane %v351, 4
      %v353 = vadd.f32 %v351, %v352
      %v354 = vrot.slane %v353, 2
      %v355 = vadd.f32 %v353, %v354
      %v356 = vrot.slane %v355, 1
      %v357 = vadd.f32 %v355, %v356
      %v358 = vsel %vm336, %v313, 0.0
      %v359 = vrot.slane %v358, 4
      %v360 = vadd.f32 %v358, %v359
      %v361 = vrot.slane %v360, 2
      %v362 = vadd.f32 %v360, %v361
      %v363 = vrot.slane %v362, 1
      %v364 = vadd.f32 %v362, %v363
      %v365 = vld [vmem:[%s2] sm:$0xff]
      %v366 = vadd.f32 %v343, 0.0
      %s367 = scalar_lea.vmem %s2, 8
      %v368 = vld [vmem:[%s367] sm:$0xff]
      %vm369 = vcmask 31744
      %v371 = vsel %vm369, %v368, 0
      %vm373 = vcmask 1043456
      %v375 = vsel %vm373, %v333, 0
      %377 = vmatprep.subr.mxu0 0.0
      %378 = vmatpush1.msra.mxu0 %v375
      %379 = vmatprep.subr.mxu0 0.0
      %380 = vmatpush1.msra.mxu0 0.0
      %381 = vmatprep.subr.mxu0 0.0
      %382 = vmatpush1.msra.mxu0 0.0
      %383 = vmatprep.subr.mxu0 0.0
      %384 = vmatpush1.msra.mxu0 0.0
      %385 = vmatprep.subr.mxu0 0.0
      %386 = vmatpush1.msra.mxu0 0.0
      %387 = vmatprep.subr.mxu0 0.0
      %388 = vmatpush1.msra.mxu0 0.0
      %389 = vmatprep.subr.mxu0 0.0
      %390 = vmatpush1.msra.mxu0 0.0
      %391 = vmatprep.subr.mxu0 0.0
      %392 = vmatpush1.msra.mxu0 0.0
      %393 = vmatprep.subr.mxu0 0.0
      %394 = vmatpush1.msra.mxu0 0.0
      %395 = vmatprep.subr.mxu0 0.0
      %396 = vmatpush1.msra.mxu0 0.0
      %397 = vmatprep.subr.mxu0 0.0
      %398 = vmatpush1.msra.mxu0 0.0
      %399 = vmatprep.subr.mxu0 0.0
      %400 = vmatpush1.msra.mxu0 0.0
      %401 = vmatprep.subr.mxu0 0.0
      %402 = vmatpush1.msra.mxu0 0.0
      %403 = vmatprep.subr.mxu0 0.0
      %404 = vmatpush1.msra.mxu0 0.0
      %405 = vmatprep.subr.mxu0 0.0
      %406 = vmatpush1.msra.mxu0 0.0
      %407 = vmatprep.subr.mxu0 0.0
      %408 = vmatpush1.msra.mxu0 0.0
      %409 = vmatprep.subr.mxu0 0.0
      %410 = vmatpush1.msra.mxu0 0.0
      %411 = vmatprep.subr.mxu0 0.0
      %412 = vmatpush1.msra.mxu0 0.0
      %413 = vmatprep.subr.mxu0 0.0
      %414 = vmatpush1.msra.mxu0 0.0
      %415 = vmatprep.subr.mxu0 0.0
      %416 = vmatpush1.msra.mxu0 0.0
      %417 = vmatprep.subr.mxu0 0.0
      %418 = vmatpush1.msra.mxu0 0.0
      %419 = vmatprep.subr.mxu0 0.0
      %420 = vmatpush1.msra.mxu0 0.0
      %421 = vmatprep.subr.mxu0 0.0
      %422 = vmatpush1.msra.mxu0 0.0
      %423 = vmatprep.subr.mxu0 0.0
      %424 = vmatpush1.msra.mxu0 0.0
      %425 = vmatprep.subr.mxu0 0.0
      %426 = vmatpush1.msra.mxu0 0.0
      %427 = vmatprep.subr.mxu0 0.0
      %428 = vmatpush1.msra.mxu0 0.0
      %429 = vmatprep.subr.mxu0 0.0
      %430 = vmatpush1.msra.mxu0 0.0
      %431 = vmatprep.subr.mxu0 0.0
      %432 = vmatpush1.msra.mxu0 0.0
      %433 = vmatprep.subr.mxu0 0.0
      %434 = vmatpush1.msra.mxu0 0.0
      %435 = vmatprep.subr.mxu0 0.0
      %436 = vmatpush1.msra.mxu0 0.0
      %437 = vmatprep.subr.mxu0 0.0
      %438 = vmatpush1.msra.mxu0 0.0
      %439 = vmatprep.subr.mxu0 0.0
      %440 = vmatpush1.msra.mxu0 0.0
      %441 = vmatprep.mubr.f32.mxu0 0.0
      %442 = vmatmul.mubr.f32.gmra.mrb[0].mxu0 %v371
      %v443 = vpop.f32.mrb[0].mxu0
      %v444 = vadd.f32 0.0, %v443
      %v445 = vpop.f32.mrb[0].mxu0
      %446 = vdwg.mxu0
      %v448 = vsel %vm369, %v365, 0
      %v451 = vsel %vm373, %v332, 0
      %453 = vmatprep.subr.mxu0 0.0
      %454 = vmatpush1.msra.mxu0 %v451
      %455 = vmatprep.subr.mxu0 0.0
      %456 = vmatpush1.msra.mxu0 0.0
      %457 = vmatprep.subr.mxu0 0.0
      %458 = vmatpush1.msra.mxu0 0.0
      %459 = vmatprep.subr.mxu0 0.0
      %460 = vmatpush1.msra.mxu0 0.0
      %461 = vmatprep.subr.mxu0 0.0
      %462 = vmatpush1.msra.mxu0 0.0
      %463 = vmatprep.subr.mxu0 0.0
      %464 = vmatpush1.msra.mxu0 0.0
      %465 = vmatprep.subr.mxu0 0.0
      %466 = vmatpush1.msra.mxu0 0.0
      %467 = vmatprep.subr.mxu0 0.0
      %468 = vmatpush1.msra.mxu0 0.0
      %469 = vmatprep.subr.mxu0 0.0
      %470 = vmatpush1.msra.mxu0 0.0
      %471 = vmatprep.subr.mxu0 0.0
      %472 = vmatpush1.msra.mxu0 0.0
      %473 = vmatprep.subr.mxu0 0.0
      %474 = vmatpush1.msra.mxu0 0.0
      %475 = vmatprep.subr.mxu0 0.0
      %476 = vmatpush1.msra.mxu0 0.0
      %477 = vmatprep.subr.mxu0 0.0
      %478 = vmatpush1.msra.mxu0 0.0
      %479 = vmatprep.subr.mxu0 0.0
      %480 = vmatpush1.msra.mxu0 0.0
      %481 = vmatprep.subr.mxu0 0.0
      %482 = vmatpush1.msra.mxu0 0.0
      %483 = vmatprep.subr.mxu0 0.0
      %484 = vmatpush1.msra.mxu0 0.0
      %485 = vmatprep.subr.mxu0 0.0
      %486 = vmatpush1.msra.mxu0 0.0
      %487 = vmatprep.subr.mxu0 0.0
      %488 = vmatpush1.msra.mxu0 0.0
      %489 = vmatprep.subr.mxu0 0.0
      %490 = vmatpush1.msra.mxu0 0.0
      %491 = vmatprep.subr.mxu0 0.0
      %492 = vmatpush1.msra.mxu0 0.0
      %493 = vmatprep.subr.mxu0 0.0
      %494 = vmatpush1.msra.mxu0 0.0
      %495 = vmatprep.subr.mxu0 0.0
      %496 = vmatpush1.msra.mxu0 0.0
      %497 = vmatprep.subr.mxu0 0.0
      %498 = vmatpush1.msra.mxu0 0.0
      %499 = vmatprep.subr.mxu0 0.0
      %500 = vmatpush1.msra.mxu0 0.0
      %501 = vmatprep.subr.mxu0 0.0
      %502 = vmatpush1.msra.mxu0 0.0
      %503 = vmatprep.subr.mxu0 0.0
      %504 = vmatpush1.msra.mxu0 0.0
      %505 = vmatprep.subr.mxu0 0.0
      %506 = vmatpush1.msra.mxu0 0.0
      %507 = vmatprep.subr.mxu0 0.0
      %508 = vmatpush1.msra.mxu0 0.0
      %509 = vmatprep.subr.mxu0 0.0
      %510 = vmatpush1.msra.mxu0 0.0
      %511 = vmatprep.subr.mxu0 0.0
      %512 = vmatpush1.msra.mxu0 0.0
      %513 = vmatprep.subr.mxu0 0.0
      %514 = vmatpush1.msra.mxu0 0.0
      %515 = vmatprep.subr.mxu0 0.0
      %516 = vmatpush1.msra.mxu0 0.0
      %517 = vmatprep.mubr.f32.mxu0 0.0
      %518 = vmatmul.mubr.f32.gmra.mrb[0].mxu0 %v448
      %v519 = vpop.f32.mrb[0].mxu0
      %v520 = vadd.f32 %v444, %v519
      %v521 = vpop.f32.mrb[0].mxu0
      %522 = vdwg.mxu0
      %v523 = vadd.f32 %v366, %v350
      %s524 = scalar_lea.vmem %s2, 16
      %v525 = vld [vmem:[%s524] sm:$0xff]
      %526 = vrot.lane.b32.xlu0 %v332, 127
      %v527 = vpop.permute.xlu0 %526
      %v529 = vsel %vm369, %v525, 0
      %v531 = vsel %vm373, %v527, 0
      %533 = vmatprep.subr.mxu0 0.0
      %534 = vmatpush1.msra.mxu0 %v531
      %535 = vmatprep.subr.mxu0 0.0
      %536 = vmatpush1.msra.mxu0 0.0
      %537 = vmatprep.subr.mxu0 0.0
      %538 = vmatpush1.msra.mxu0 0.0
      %539 = vmatprep.subr.mxu0 0.0
      %540 = vmatpush1.msra.mxu0 0.0
      %541 = vmatprep.subr.mxu0 0.0
      %542 = vmatpush1.msra.mxu0 0.0
      %543 = vmatprep.subr.mxu0 0.0
      %544 = vmatpush1.msra.mxu0 0.0
      %545 = vmatprep.subr.mxu0 0.0
      %546 = vmatpush1.msra.mxu0 0.0
      %547 = vmatprep.subr.mxu0 0.0
      %548 = vmatpush1.msra.mxu0 0.0
      %549 = vmatprep.subr.mxu0 0.0
      %550 = vmatpush1.msra.mxu0 0.0
      %551 = vmatprep.subr.mxu0 0.0
      %552 = vmatpush1.msra.mxu0 0.0
      %553 = vmatprep.subr.mxu0 0.0
      %554 = vmatpush1.msra.mxu0 0.0
      %555 = vmatprep.subr.mxu0 0.0
      %556 = vmatpush1.msra.mxu0 0.0
      %557 = vmatprep.subr.mxu0 0.0
      %558 = vmatpush1.msra.mxu0 0.0
      %559 = vmatprep.subr.mxu0 0.0
      %560 = vmatpush1.msra.mxu0 0.0
      %561 = vmatprep.subr.mxu0 0.0
      %562 = vmatpush1.msra.mxu0 0.0
      %563 = vmatprep.subr.mxu0 0.0
      %564 = vmatpush1.msra.mxu0 0.0
      %565 = vmatprep.subr.mxu0 0.0
      %566 = vmatpush1.msra.mxu0 0.0
      %567 = vmatprep.subr.mxu0 0.0
      %568 = vmatpush1.msra.mxu0 0.0
      %569 = vmatprep.subr.mxu0 0.0
      %570 = vmatpush1.msra.mxu0 0.0
      %571 = vmatprep.subr.mxu0 0.0
      %572 = vmatpush1.msra.mxu0 0.0
      %573 = vmatprep.subr.mxu0 0.0
      %574 = vmatpush1.msra.mxu0 0.0
      %575 = vmatprep.subr.mxu0 0.0
      %576 = vmatpush1.msra.mxu0 0.0
      %577 = vmatprep.subr.mxu0 0.0
      %578 = vmatpush1.msra.mxu0 0.0
      %579 = vmatprep.subr.mxu0 0.0
      %580 = vmatpush1.msra.mxu0 0.0
      %581 = vmatprep.subr.mxu0 0.0
      %582 = vmatpush1.msra.mxu0 0.0
      %583 = vmatprep.subr.mxu0 0.0
      %584 = vmatpush1.msra.mxu0 0.0
      %585 = vmatprep.subr.mxu0 0.0
      %586 = vmatpush1.msra.mxu0 0.0
      %587 = vmatprep.subr.mxu0 0.0
      %588 = vmatpush1.msra.mxu0 0.0
      %589 = vmatprep.subr.mxu0 0.0
      %590 = vmatpush1.msra.mxu0 0.0
      %591 = vmatprep.subr.mxu0 0.0
      %592 = vmatpush1.msra.mxu0 0.0
      %593 = vmatprep.subr.mxu0 0.0
      %594 = vmatpush1.msra.mxu0 0.0
      %595 = vmatprep.subr.mxu0 0.0
      %596 = vmatpush1.msra.mxu0 0.0
      %597 = vmatprep.mubr.f32.mxu0 0.0
      %598 = vmatmul.mubr.f32.gmra.mrb[0].mxu0 %v529
      %v599 = vpop.f32.mrb[0].mxu0
      %v600 = vadd.f32 0.0, %v599
      %v601 = vpop.f32.mrb[0].mxu0
      %602 = vdwg.mxu0
      %v603 = vadd.f32 %v520, %v600
      %605 = vrot.lane.b32.xlu0 %v343, 127
      %v606 = vpop.permute.xlu0 %605
      %v608 = vadd.f32 %v523, %v606
      %s609 = scalar_lea.vmem %s2, 24
      %v610 = vld [vmem:[%s609] sm:$0xff]
      %v612 = vsel %vm369, %v610, 0
      %v615 = vsel %vm373, %v334, 0
      %617 = vmatprep.subr.mxu0 0.0
      %618 = vmatpush1.msra.mxu0 %v615
      %619 = vmatprep.subr.mxu0 0.0
      %620 = vmatpush1.msra.mxu0 0.0
      %621 = vmatprep.subr.mxu0 0.0
      %622 = vmatpush1.msra.mxu0 0.0
      %623 = vmatprep.subr.mxu0 0.0
      %624 = vmatpush1.msra.mxu0 0.0
      %625 = vmatprep.subr.mxu0 0.0
      %626 = vmatpush1.msra.mxu0 0.0
      %627 = vmatprep.subr.mxu0 0.0
      %628 = vmatpush1.msra.mxu0 0.0
      %629 = vmatprep.subr.mxu0 0.0
      %630 = vmatpush1.msra.mxu0 0.0
      %631 = vmatprep.subr.mxu0 0.0
      %632 = vmatpush1.msra.mxu0 0.0
      %633 = vmatprep.subr.mxu0 0.0
      %634 = vmatpush1.msra.mxu0 0.0
      %635 = vmatprep.subr.mxu0 0.0
      %636 = vmatpush1.msra.mxu0 0.0
      %637 = vmatprep.subr.mxu0 0.0
      %638 = vmatpush1.msra.mxu0 0.0
      %639 = vmatprep.subr.mxu0 0.0
      %640 = vmatpush1.msra.mxu0 0.0
      %641 = vmatprep.subr.mxu0 0.0
      %642 = vmatpush1.msra.mxu0 0.0
      %643 = vmatprep.subr.mxu0 0.0
      %644 = vmatpush1.msra.mxu0 0.0
      %645 = vmatprep.subr.mxu0 0.0
      %646 = vmatpush1.msra.mxu0 0.0
      %647 = vmatprep.subr.mxu0 0.0
      %648 = vmatpush1.msra.mxu0 0.0
      %649 = vmatprep.subr.mxu0 0.0
      %650 = vmatpush1.msra.mxu0 0.0
      %651 = vmatprep.subr.mxu0 0.0
      %652 = vmatpush1.msra.mxu0 0.0
      %653 = vmatprep.subr.mxu0 0.0
      %654 = vmatpush1.msra.mxu0 0.0
      %655 = vmatprep.subr.mxu0 0.0
      %656 = vmatpush1.msra.mxu0 0.0
      %657 = vmatprep.subr.mxu0 0.0
      %658 = vmatpush1.msra.mxu0 0.0
      %659 = vmatprep.subr.mxu0 0.0
      %660 = vmatpush1.msra.mxu0 0.0
      %661 = vmatprep.subr.mxu0 0.0
      %662 = vmatpush1.msra.mxu0 0.0
      %663 = vmatprep.subr.mxu0 0.0
      %664 = vmatpush1.msra.mxu0 0.0
      %665 = vmatprep.subr.mxu0 0.0
      %666 = vmatpush1.msra.mxu0 0.0
      %667 = vmatprep.subr.mxu0 0.0
      %668 = vmatpush1.msra.mxu0 0.0
      %669 = vmatprep.subr.mxu0 0.0
      %670 = vmatpush1.msra.mxu0 0.0
      %671 = vmatprep.subr.mxu0 0.0
      %672 = vmatpush1.msra.mxu0 0.0
      %673 = vmatprep.subr.mxu0 0.0
      %674 = vmatpush1.msra.mxu0 0.0
      %675 = vmatprep.subr.mxu0 0.0
      %676 = vmatpush1.msra.mxu0 0.0
      %677 = vmatprep.subr.mxu0 0.0
      %678 = vmatpush1.msra.mxu0 0.0
      %679 = vmatprep.subr.mxu0 0.0
      %680 = vmatpush1.msra.mxu0 0.0
      %681 = vmatprep.mubr.f32.mxu0 0.0
      %682 = vmatmul.mubr.f32.gmra.mrb[0].mxu0 %v612
      %v683 = vpop.f32.mrb[0].mxu0
      %v684 = vadd.f32 0.0, %v683
      %v685 = vpop.f32.mrb[0].mxu0
      %686 = vdwg.mxu0
      %v687 = vadd.f32 %v603, %v684
      %v688 = vadd.f32 %v608, %v357
      %s689 = scalar_lea.vmem %s2, 32
      %v690 = vld [vmem:[%s689] sm:$0xff]
      %v692 = vsel %vm369, %v690, 0
      %v695 = vsel %vm373, %v335, 0
      %697 = vmatprep.subr.mxu0 0.0
      %698 = vmatpush1.msra.mxu0 %v695
      %699 = vmatprep.subr.mxu0 0.0
      %700 = vmatpush1.msra.mxu0 0.0
      %701 = vmatprep.subr.mxu0 0.0
      %702 = vmatpush1.msra.mxu0 0.0
      %703 = vmatprep.subr.mxu0 0.0
      %704 = vmatpush1.msra.mxu0 0.0
      %705 = vmatprep.subr.mxu0 0.0
      %706 = vmatpush1.msra.mxu0 0.0
      %707 = vmatprep.subr.mxu0 0.0
      %708 = vmatpush1.msra.mxu0 0.0
      %709 = vmatprep.subr.mxu0 0.0
      %710 = vmatpush1.msra.mxu0 0.0
      %711 = vmatprep.subr.mxu0 0.0
      %712 = vmatpush1.msra.mxu0 0.0
      %713 = vmatprep.subr.mxu0 0.0
      %714 = vmatpush1.msra.mxu0 0.0
      %715 = vmatprep.subr.mxu0 0.0
      %716 = vmatpush1.msra.mxu0 0.0
      %717 = vmatprep.subr.mxu0 0.0
      %718 = vmatpush1.msra.mxu0 0.0
      %719 = vmatprep.subr.mxu0 0.0
      %720 = vmatpush1.msra.mxu0 0.0
      %721 = vmatprep.subr.mxu0 0.0
      %722 = vmatpush1.msra.mxu0 0.0
      %723 = vmatprep.subr.mxu0 0.0
      %724 = vmatpush1.msra.mxu0 0.0
      %725 = vmatprep.subr.mxu0 0.0
      %726 = vmatpush1.msra.mxu0 0.0
      %727 = vmatprep.subr.mxu0 0.0
      %728 = vmatpush1.msra.mxu0 0.0
      %729 = vmatprep.subr.mxu0 0.0
      %730 = vmatpush1.msra.mxu0 0.0
      %731 = vmatprep.subr.mxu0 0.0
      %732 = vmatpush1.msra.mxu0 0.0
      %733 = vmatprep.subr.mxu0 0.0
      %734 = vmatpush1.msra.mxu0 0.0
      %735 = vmatprep.subr.mxu0 0.0
      %736 = vmatpush1.msra.mxu0 0.0
      %737 = vmatprep.subr.mxu0 0.0
      %738 = vmatpush1.msra.mxu0 0.0
      %739 = vmatprep.subr.mxu0 0.0
      %740 = vmatpush1.msra.mxu0 0.0
      %741 = vmatprep.subr.mxu0 0.0
      %742 = vmatpush1.msra.mxu0 0.0
      %743 = vmatprep.subr.mxu0 0.0
      %744 = vmatpush1.msra.mxu0 0.0
      %745 = vmatprep.subr.mxu0 0.0
      %746 = vmatpush1.msra.mxu0 0.0
      %747 = vmatprep.subr.mxu0 0.0
      %748 = vmatpush1.msra.mxu0 0.0
      %749 = vmatprep.subr.mxu0 0.0
      %750 = vmatpush1.msra.mxu0 0.0
      %751 = vmatprep.subr.mxu0 0.0
      %752 = vmatpush1.msra.mxu0 0.0
      %753 = vmatprep.subr.mxu0 0.0
      %754 = vmatpush1.msra.mxu0 0.0
      %755 = vmatprep.subr.mxu0 0.0
      %756 = vmatpush1.msra.mxu0 0.0
      %757 = vmatprep.subr.mxu0 0.0
      %758 = vmatpush1.msra.mxu0 0.0
      %759 = vmatprep.subr.mxu0 0.0
      %760 = vmatpush1.msra.mxu0 0.0
      %761 = vmatprep.mubr.f32.mxu0 0.0
      %762 = vmatmul.mubr.f32.gmra.mrb[0].mxu0 %v692
      %v763 = vpop.f32.mrb[0].mxu0
      %v764 = vadd.f32 0.0, %v763
      %v765 = vpop.f32.mrb[0].mxu0
      %766 = vdwg.mxu0
      %v767 = vadd.f32 %v687, %v764
      %v768 = vadd.f32 %v688, %v364
      %s769 = scalar_lea.vmem %s2, 40
      %v770 = vld [vmem:[%s769] sm:$0xff]
      %771 = vrot.lane.b32.xlu0 %v334, 127
      %v772 = vpop.permute.xlu0 %771
      %v774 = vsel %vm369, %v770, 0
      %v776 = vsel %vm373, %v772, 0
      %778 = vmatprep.subr.mxu0 0.0
      %779 = vmatpush1.msra.mxu0 %v776
      %780 = vmatprep.subr.mxu0 0.0
      %781 = vmatpush1.msra.mxu0 0.0
      %782 = vmatprep.subr.mxu0 0.0
      %783 = vmatpush1.msra.mxu0 0.0
      %784 = vmatprep.subr.mxu0 0.0
      %785 = vmatpush1.msra.mxu0 0.0
      %786 = vmatprep.subr.mxu0 0.0
      %787 = vmatpush1.msra.mxu0 0.0
      %788 = vmatprep.subr.mxu0 0.0
      %789 = vmatpush1.msra.mxu0 0.0
      %790 = vmatprep.subr.mxu0 0.0
      %791 = vmatpush1.msra.mxu0 0.0
      %792 = vmatprep.subr.mxu0 0.0
      %793 = vmatpush1.msra.mxu0 0.0
      %794 = vmatprep.subr.mxu0 0.0
      %795 = vmatpush1.msra.mxu0 0.0
      %796 = vmatprep.subr.mxu0 0.0
      %797 = vmatpush1.msra.mxu0 0.0
      %798 = vmatprep.subr.mxu0 0.0
      %799 = vmatpush1.msra.mxu0 0.0
      %800 = vmatprep.subr.mxu0 0.0
      %801 = vmatpush1.msra.mxu0 0.0
      %802 = vmatprep.subr.mxu0 0.0
      %803 = vmatpush1.msra.mxu0 0.0
      %804 = vmatprep.subr.mxu0 0.0
      %805 = vmatpush1.msra.mxu0 0.0
      %806 = vmatprep.subr.mxu0 0.0
      %807 = vmatpush1.msra.mxu0 0.0
      %808 = vmatprep.subr.mxu0 0.0
      %809 = vmatpush1.msra.mxu0 0.0
      %810 = vmatprep.subr.mxu0 0.0
      %811 = vmatpush1.msra.mxu0 0.0
      %812 = vmatprep.subr.mxu0 0.0
      %813 = vmatpush1.msra.mxu0 0.0
      %814 = vmatprep.subr.mxu0 0.0
      %815 = vmatpush1.msra.mxu0 0.0
      %816 = vmatprep.subr.mxu0 0.0
      %817 = vmatpush1.msra.mxu0 0.0
      %818 = vmatprep.subr.mxu0 0.0
      %819 = vmatpush1.msra.mxu0 0.0
      %820 = vmatprep.subr.mxu0 0.0
      %821 = vmatpush1.msra.mxu0 0.0
      %822 = vmatprep.subr.mxu0 0.0
      %823 = vmatpush1.msra.mxu0 0.0
      %824 = vmatprep.subr.mxu0 0.0
      %825 = vmatpush1.msra.mxu0 0.0
      %826 = vmatprep.subr.mxu0 0.0
      %827 = vmatpush1.msra.mxu0 0.0
      %828 = vmatprep.subr.mxu0 0.0
      %829 = vmatpush1.msra.mxu0 0.0
      %830 = vmatprep.subr.mxu0 0.0
      %831 = vmatpush1.msra.mxu0 0.0
      %832 = vmatprep.subr.mxu0 0.0
      %833 = vmatpush1.msra.mxu0 0.0
      %834 = vmatprep.subr.mxu0 0.0
      %835 = vmatpush1.msra.mxu0 0.0
      %836 = vmatprep.subr.mxu0 0.0
      %837 = vmatpush1.msra.mxu0 0.0
      %838 = vmatprep.subr.mxu0 0.0
      %839 = vmatpush1.msra.mxu0 0.0
      %840 = vmatprep.subr.mxu0 0.0
      %841 = vmatpush1.msra.mxu0 0.0
      %842 = vmatprep.mubr.f32.mxu0 0.0
      %843 = vmatmul.mubr.f32.gmra.mrb[0].mxu0 %v774
      %v844 = vpop.f32.mrb[0].mxu0
      %v845 = vadd.f32 0.0, %v844
      %v846 = vpop.f32.mrb[0].mxu0
      %847 = vdwg.mxu0
      %v848 = vadd.f32 %v767, %v845
      %850 = vrot.lane.b32.xlu0 %v357, 127
      %v851 = vpop.permute.xlu0 %850
      %v853 = vadd.f32 %v768, %v851
      %s854 = scalar_lea.vmem %s2, 48
      %v855 = vld [vmem:[%s854] sm:$0xff]
      %856 = vrot.lane.b32.xlu0 %v332, 119
      %v857 = vpop.permute.xlu0 %856
      %v859 = vsel %vm369, %v855, 0
      %v861 = vsel %vm373, %v857, 0
      %863 = vmatprep.subr.mxu0 0.0
      %864 = vmatpush1.msra.mxu0 %v861
      %865 = vmatprep.subr.mxu0 0.0
      %866 = vmatpush1.msra.mxu0 0.0
      %867 = vmatprep.subr.mxu0 0.0
      %868 = vmatpush1.msra.mxu0 0.0
      %869 = vmatprep.subr.mxu0 0.0
      %870 = vmatpush1.msra.mxu0 0.0
      %871 = vmatprep.subr.mxu0 0.0
      %872 = vmatpush1.msra.mxu0 0.0
      %873 = vmatprep.subr.mxu0 0.0
      %874 = vmatpush1.msra.mxu0 0.0
      %875 = vmatprep.subr.mxu0 0.0
      %876 = vmatpush1.msra.mxu0 0.0
      %877 = vmatprep.subr.mxu0 0.0
      %878 = vmatpush1.msra.mxu0 0.0
      %879 = vmatprep.subr.mxu0 0.0
      %880 = vmatpush1.msra.mxu0 0.0
      %881 = vmatprep.subr.mxu0 0.0
      %882 = vmatpush1.msra.mxu0 0.0
      %883 = vmatprep.subr.mxu0 0.0
      %884 = vmatpush1.msra.mxu0 0.0
      %885 = vmatprep.subr.mxu0 0.0
      %886 = vmatpush1.msra.mxu0 0.0
      %887 = vmatprep.subr.mxu0 0.0
      %888 = vmatpush1.msra.mxu0 0.0
      %889 = vmatprep.subr.mxu0 0.0
      %890 = vmatpush1.msra.mxu0 0.0
      %891 = vmatprep.subr.mxu0 0.0
      %892 = vmatpush1.msra.mxu0 0.0
      %893 = vmatprep.subr.mxu0 0.0
      %894 = vmatpush1.msra.mxu0 0.0
      %895 = vmatprep.subr.mxu0 0.0
      %896 = vmatpush1.msra.mxu0 0.0
      %897 = vmatprep.subr.mxu0 0.0
      %898 = vmatpush1.msra.mxu0 0.0
      %899 = vmatprep.subr.mxu0 0.0
      %900 = vmatpush1.msra.mxu0 0.0
      %901 = vmatprep.subr.mxu0 0.0
      %902 = vmatpush1.msra.mxu0 0.0
      %903 = vmatprep.subr.mxu0 0.0
      %904 = vmatpush1.msra.mxu0 0.0
      %905 = vmatprep.subr.mxu0 0.0
      %906 = vmatpush1.msra.mxu0 0.0
      %907 = vmatprep.subr.mxu0 0.0
      %908 = vmatpush1.msra.mxu0 0.0
      %909 = vmatprep.subr.mxu0 0.0
      %910 = vmatpush1.msra.mxu0 0.0
      %911 = vmatprep.subr.mxu0 0.0
      %912 = vmatpush1.msra.mxu0 0.0
      %913 = vmatprep.subr.mxu0 0.0
      %914 = vmatpush1.msra.mxu0 0.0
      %915 = vmatprep.subr.mxu0 0.0
      %916 = vmatpush1.msra.mxu0 0.0
      %917 = vmatprep.subr.mxu0 0.0
      %918 = vmatpush1.msra.mxu0 0.0
      %919 = vmatprep.subr.mxu0 0.0
      %920 = vmatpush1.msra.mxu0 0.0
      %921 = vmatprep.subr.mxu0 0.0
      %922 = vmatpush1.msra.mxu0 0.0
      %923 = vmatprep.subr.mxu0 0.0
      %924 = vmatpush1.msra.mxu0 0.0
      %925 = vmatprep.subr.mxu0 0.0
      %926 = vmatpush1.msra.mxu0 0.0
      %927 = vmatprep.mubr.f32.mxu0 0.0
      %928 = vmatmul.mubr.f32.gmra.mrb[0].mxu0 %v859
      %v929 = vpop.f32.mrb[0].mxu0
      %v930 = vadd.f32 0.0, %v929
      %v931 = vpop.f32.mrb[0].mxu0
      %932 = vdwg.mxu0
      %v933 = vadd.f32 %v848, %v930
      %934 = vrot.lane.b32.xlu0 %v343, 119
      %v935 = vpop.permute.xlu0 %934
      %v937 = vadd.f32 %v853, %v935
      %s938 = scalar_lea.vmem %s2, 56
      %v939 = vld [vmem:[%s938] sm:$0xff]
      %940 = vrot.lane.b32.xlu0 %v333, 119
      %v941 = vpop.permute.xlu0 %940
      %v943 = vsel %vm369, %v939, 0
      %v945 = vsel %vm373, %v941, 0
      %947 = vmatprep.subr.mxu0 0.0
      %948 = vmatpush1.msra.mxu0 %v945
      %949 = vmatprep.subr.mxu0 0.0
      %950 = vmatpush1.msra.mxu0 0.0
      %951 = vmatprep.subr.mxu0 0.0
      %952 = vmatpush1.msra.mxu0 0.0
      %953 = vmatprep.subr.mxu0 0.0
      %954 = vmatpush1.msra.mxu0 0.0
      %955 = vmatprep.subr.mxu0 0.0
      %956 = vmatpush1.msra.mxu0 0.0
      %957 = vmatprep.subr.mxu0 0.0
      %958 = vmatpush1.msra.mxu0 0.0
      %959 = vmatprep.subr.mxu0 0.0
      %960 = vmatpush1.msra.mxu0 0.0
      %961 = vmatprep.subr.mxu0 0.0
      %962 = vmatpush1.msra.mxu0 0.0
      %963 = vmatprep.subr.mxu0 0.0
      %964 = vmatpush1.msra.mxu0 0.0
      %965 = vmatprep.subr.mxu0 0.0
      %966 = vmatpush1.msra.mxu0 0.0
      %967 = vmatprep.subr.mxu0 0.0
      %968 = vmatpush1.msra.mxu0 0.0
      %969 = vmatprep.subr.mxu0 0.0
      %970 = vmatpush1.msra.mxu0 0.0
      %971 = vmatprep.subr.mxu0 0.0
      %972 = vmatpush1.msra.mxu0 0.0
      %973 = vmatprep.subr.mxu0 0.0
      %974 = vmatpush1.msra.mxu0 0.0
      %975 = vmatprep.subr.mxu0 0.0
      %976 = vmatpush1.msra.mxu0 0.0
      %977 = vmatprep.subr.mxu0 0.0
      %978 = vmatpush1.msra.mxu0 0.0
      %979 = vmatprep.subr.mxu0 0.0
      %980 = vmatpush1.msra.mxu0 0.0
      %981 = vmatprep.subr.mxu0 0.0
      %982 = vmatpush1.msra.mxu0 0.0
      %983 = vmatprep.subr.mxu0 0.0
      %984 = vmatpush1.msra.mxu0 0.0
      %985 = vmatprep.subr.mxu0 0.0
      %986 = vmatpush1.msra.mxu0 0.0
      %987 = vmatprep.subr.mxu0 0.0
      %988 = vmatpush1.msra.mxu0 0.0
      %989 = vmatprep.subr.mxu0 0.0
      %990 = vmatpush1.msra.mxu0 0.0
      %991 = vmatprep.subr.mxu0 0.0
      %992 = vmatpush1.msra.mxu0 0.0
      %993 = vmatprep.subr.mxu0 0.0
      %994 = vmatpush1.msra.mxu0 0.0
      %995 = vmatprep.subr.mxu0 0.0
      %996 = vmatpush1.msra.mxu0 0.0
      %997 = vmatprep.subr.mxu0 0.0
      %998 = vmatpush1.msra.mxu0 0.0
      %999 = vmatprep.subr.mxu0 0.0
      %1000 = vmatpush1.msra.mxu0 0.0
      %1001 = vmatprep.subr.mxu0 0.0
      %1002 = vmatpush1.msra.mxu0 0.0
      %1003 = vmatprep.subr.mxu0 0.0
      %1004 = vmatpush1.msra.mxu0 0.0
      %1005 = vmatprep.subr.mxu0 0.0
      %1006 = vmatpush1.msra.mxu0 0.0
      %1007 = vmatprep.subr.mxu0 0.0
      %1008 = vmatpush1.msra.mxu0 0.0
      %1009 = vmatprep.subr.mxu0 0.0
      %1010 = vmatpush1.msra.mxu0 0.0
      %1011 = vmatprep.mubr.f32.mxu0 0.0
      %1012 = vmatmul.mubr.f32.gmra.mrb[0].mxu0 %v943
      %v1013 = vpop.f32.mrb[0].mxu0
      %v1014 = vadd.f32 0.0, %v1013
      %v1015 = vpop.f32.mrb[0].mxu0
      %1016 = vdwg.mxu0
      %v1017 = vadd.f32 %v933, %v1014
      %1019 = vrot.lane.b32.xlu0 %v350, 119
      %v1020 = vpop.permute.xlu0 %1019
      %v1022 = vadd.f32 %v937, %v1020
      %s1023 = scalar_lea.vmem %s2, 64
      %v1024 = vld [vmem:[%s1023] sm:$0xff]
      %1025 = vrot.lane.b32.xlu0 %v332, 118
      %v1026 = vpop.permute.xlu0 %1025
      %v1028 = vsel %vm369, %v1024, 0
      %v1030 = vsel %vm373, %v1026, 0
      %1032 = vmatprep.subr.mxu0 0.0
      %1033 = vmatpush1.msra.mxu0 %v1030
      %1034 = vmatprep.subr.mxu0 0.0
      %1035 = vmatpush1.msra.mxu0 0.0
      %1036 = vmatprep.subr.mxu0 0.0
      %1037 = vmatpush1.msra.mxu0 0.0
      %1038 = vmatprep.subr.mxu0 0.0
      %1039 = vmatpush1.msra.mxu0 0.0
      %1040 = vmatprep.subr.mxu0 0.0
      %1041 = vmatpush1.msra.mxu0 0.0
      %1042 = vmatprep.subr.mxu0 0.0
      %1043 = vmatpush1.msra.mxu0 0.0
      %1044 = vmatprep.subr.mxu0 0.0
      %1045 = vmatpush1.msra.mxu0 0.0
      %1046 = vmatprep.subr.mxu0 0.0
      %1047 = vmatpush1.msra.mxu0 0.0
      %1048 = vmatprep.subr.mxu0 0.0
      %1049 = vmatpush1.msra.mxu0 0.0
      %1050 = vmatprep.subr.mxu0 0.0
      %1051 = vmatpush1.msra.mxu0 0.0
      %1052 = vmatprep.subr.mxu0 0.0
      %1053 = vmatpush1.msra.mxu0 0.0
      %1054 = vmatprep.subr.mxu0 0.0
      %1055 = vmatpush1.msra.mxu0 0.0
      %1056 = vmatprep.subr.mxu0 0.0
      %1057 = vmatpush1.msra.mxu0 0.0
      %1058 = vmatprep.subr.mxu0 0.0
      %1059 = vmatpush1.msra.mxu0 0.0
      %1060 = vmatprep.subr.mxu0 0.0
      %1061 = vmatpush1.msra.mxu0 0.0
      %1062 = vmatprep.subr.mxu0 0.0
      %1063 = vmatpush1.msra.mxu0 0.0
      %1064 = vmatprep.subr.mxu0 0.0
      %1065 = vmatpush1.msra.mxu0 0.0
      %1066 = vmatprep.subr.mxu0 0.0
      %1067 = vmatpush1.msra.mxu0 0.0
      %1068 = vmatprep.subr.mxu0 0.0
      %1069 = vmatpush1.msra.mxu0 0.0
      %1070 = vmatprep.subr.mxu0 0.0
      %1071 = vmatpush1.msra.mxu0 0.0
      %1072 = vmatprep.subr.mxu0 0.0
      %1073 = vmatpush1.msra.mxu0 0.0
      %1074 = vmatprep.subr.mxu0 0.0
      %1075 = vmatpush1.msra.mxu0 0.0
      %1076 = vmatprep.subr.mxu0 0.0
      %1077 = vmatpush1.msra.mxu0 0.0
      %1078 = vmatprep.subr.mxu0 0.0
      %1079 = vmatpush1.msra.mxu0 0.0
      %1080 = vmatprep.subr.mxu0 0.0
      %1081 = vmatpush1.msra.mxu0 0.0
      %1082 = vmatprep.subr.mxu0 0.0
      %1083 = vmatpush1.msra.mxu0 0.0
      %1084 = vmatprep.subr.mxu0 0.0
      %1085 = vmatpush1.msra.mxu0 0.0
      %1086 = vmatprep.subr.mxu0 0.0
      %1087 = vmatpush1.msra.mxu0 0.0
      %1088 = vmatprep.subr.mxu0 0.0
      %1089 = vmatpush1.msra.mxu0 0.0
      %1090 = vmatprep.subr.mxu0 0.0
      %1091 = vmatpush1.msra.mxu0 0.0
      %1092 = vmatprep.subr.mxu0 0.0
      %1093 = vmatpush1.msra.mxu0 0.0
      %1094 = vmatprep.subr.mxu0 0.0
      %1095 = vmatpush1.msra.mxu0 0.0
      %1096 = vmatprep.mubr.f32.mxu0 0.0
      %1097 = vmatmul.mubr.f32.gmra.mrb[0].mxu0 %v1028
      %v1098 = vpop.f32.mrb[0].mxu0
      %v1099 = vadd.f32 0.0, %v1098
      %v1100 = vpop.f32.mrb[0].mxu0
      %1101 = vdwg.mxu0
      %v1102 = vadd.f32 %v1017, %v1099
      %1103 = vrot.lane.b32.xlu0 %v343, 118
      %v1104 = vpop.permute.xlu0 %1103
      %v1106 = vadd.f32 %v1022, %v1104
      %v1107 = vmax.f32 %v1106, 0.0
      %v1108 = vmin.f32 %v1107, 1.0
      %v1109 = vadd.f32 %v1106, 1e-08
      %v1110 = vrcp.pop %v1109
      %v1111 = vmul.f32 36.0, %v1110
      %v1112 = vmul.f32 %v1111, %v1108
      %v1113 = vlaneseq
      %v1114 = vshrl.u32 %v1113, 7
      %v1115 = vsub.s32 0, %v1114
      %v1116 = vrot.slane %v1112, %v1115
      %v1117 = vmul.f32 %v1102, %v1116
      %v1118 = vld [vmem:[%s3] sm:$0xff]
      %1120 = vset.pattern.permute.xlu0 0
      %1121 = vperm.xlu0 %1120, %v1118
      %v1122 = vpop.permute.xlu0 %1121
      %v1124 = vadd.f32 %v1117, %v1122
      %v1125 = vlaneseq
      %v1126 = vshrl.u32 %v1125, 7
      %v1127 = vsub.s32 0, %v1126
      %v1128 = vrot.slane %v1108, %v1127
      %v1129 = vmul.f32 %v1124, %v1128
      %vm1130 = vcmp.gt.f32.partialorder %v1129, 0.0
      %v1131 = vld [vmem:[%s5] sm:$0xff]
      %1133 = vset.pattern.permute.xlu0 0
      %1134 = vperm.xlu0 %1133, %v1131
      %v1135 = vpop.permute.xlu0 %1134
      %v1137 = vmul.f32 %v1135, %v1129
      %v1138 = vsel %vm1130, %v1129, %v1137
      %v1139 = vmul.f32 %v1138, %v1128
      %v1140 = vpack.c.bf16 %v1139, %v1139
      %vm1141 = vcmask 584704
      %1142 = vst.msk [vmem:[%s302] sm:$0xf] %vm1141, %v1140
      %vm1143 = vcmask 581632
      %1144 = vst.msk [vmem:[%s305] sm:$0x1] %vm1143, %v1108
      %p1145 = scmp.lt.s32.totalorder %s19, 1
      %s1146 = scalar_select %p1145, %s19, 1
      %s1147 = smul.addr %s1146, 4
      %s1148 = scalar_lea.vmem %s6, %s1147
      %p1149 = scmp.lt.s32.totalorder %s19, 1
      %s1150 = scalar_select %p1149, %s19, 1
      %s1151 = scalar_lea.vmem %s7, %s1150
      // Predicated region
      $region45: #{downsample_forward.2} parent=43 // pred_check
        %p1152 = pneg %p173
      $region46: #{downsample_forward.2} parent=43 // pred_check_branch
        %1154 = sbr.rel (%p1152) target = $region48
      $region47: #{downsample_forward.2} parent=43 // pred_region
        _
      $region48: #{downsample_forward.2} parent=43 // pred_fallthru
        _
      // Predicated region
      $region49: #{downsample_forward.2} parent=43 // pred_check
        %p1155 = pneg %p199
      $region50: #{downsample_forward.2} parent=43 // pred_check_branch
        %1157 = sbr.rel (%p1155) target = $region52
      $region51: #{downsample_forward.2} parent=43 // pred_region
        _
      $region52: #{downsample_forward.2} parent=43 // pred_fallthru
        _
    $region44: #{downsample_forward.2} parent=5 // pred_fallthru
      _
    %p1158 = scmp.le.s32.totalorder 2, %s14
    // Predicated region
    $region53: #{downsample_forward.2} parent=5 // pred_check
      %p1159 = pneg %p1158
    $region54: #{downsample_forward.2} parent=5 // pred_check_branch
      %1161 = sbr.rel (%p1159) target = $region56
    $region55: #{downsample_forward.2} parent=5 // pred_region
      %s1162 = ssub.s32 %s14, 2
      // Predicated region
      $region57: #{downsample_forward.2} parent=55 // pred_check
        %p1163 = pneg %p179
      $region58: #{downsample_forward.2} parent=55 // pred_check_branch
        %1165 = sbr.rel (%p1163) target = $region60
      $region59: #{downsample_forward.2} parent=55 // pred_region
        %p1166 = scmp.lt.s32.totalorder %s20, 1
        %s1167 = scalar_select %p1166, %s20, 1
        %s1168 = smul.addr %s1167, 4
        %s1169 = scalar_lea.vmem %s6, %s1168
      $region60: #{downsample_forward.2} parent=55 // pred_fallthru
        _
      // Predicated region
      $region61: #{downsample_forward.2} parent=55 // pred_check
        %p1170 = pneg %p205
      $region62: #{downsample_forward.2} parent=55 // pred_check_branch
        %1172 = sbr.rel (%p1170) target = $region64
      $region63: #{downsample_forward.2} parent=55 // pred_region
        %p1173 = scmp.lt.s32.totalorder %s20, 1
        %s1174 = scalar_select %p1173, %s20, 1
        %s1175 = scalar_lea.vmem %s7, %s1174
      $region64: #{downsample_forward.2} parent=55 // pred_fallthru
        _
    $region56: #{downsample_forward.2} parent=5 // pred_fallthru
      _
  $region6: #{downsample_forward.2} parent=0 // loop_footer
    %s18 = sadd.s32 1, %s14
  $region7: #{downsample_forward.2} parent=0 // loop_footer_branch
    %13 = sbr.rel target = $region3
  $region8: #{downsample_forward.2} parent=0 // loop_exit
    _

// kernel: downsample_forward.3
$region0: #{downsample_forward.3}
  #allocation0 [shape = 'u32[]', space=smem, size = 0x4, offset = 0x4, fixed_abs, tag = 'smem constant byte address 0x4 - core index']
  #allocation1 [shape = 'u32[144,128]{1,0:T(1,128)}', space=vmem, size = 0x12000, scoped, tag = 'internal scratch']
  %s0 = inlined_call_operand.vmem [shape: bf16[2,1,8,102], index: 0, kind: input, shape index: {}]
  %s1 = inlined_call_operand.vmem [shape: f32[2,1,1,102], index: 1, kind: input, shape index: {}]
  %s2 = inlined_call_operand.vmem [shape: f32[9,16,8], index: 2, kind: input, shape index: {}]
  %s3 = inlined_call_operand.vmem [shape: f32[16,1], index: 3, kind: input, shape index: {}]
  %s4 = inlined_call_operand.vmem [shape: f32[1,8,1], index: 4, kind: input, shape index: {}]
  %s5 = inlined_call_operand.vmem [shape: f32[16,1], index: 5, kind: input, shape index: {}]
  %s6 = inlined_call_operand.vmem [shape: f32[2,16,80], index: 6, kind: output, shape index: {0}]
  %s7 = inlined_call_operand.vmem [shape: f32[2,1,80], index: 7, kind: output, shape index: {1}]
  %8 = xla_tuple %s6, %s7
  %s9 = sld [smem:[#allocation0]]
  $region65: #{downsample_forward.3} parent=0
    _
  %s11 = ssub.s32 1, %s9
  %s12 = scalar_select 0, %s11, %s9
  loop: start=0, step=1, limit=4
  $region2: #{downsample_forward.3} parent=0 // loop_pre_header
    _
  $region3: #{downsample_forward.3} parent=0 // loop_header
    %s14 = sphi 0, %s18
    %p15 = scmp.ge.s32.totalorder %s14, 4
    %s24 = sphi 0, %s26
    %s27 = sphi 0, %s24
    %s28 = sphi 0, %s27
    %s44 = sphi 0, %s28
    %s50 = sphi 0, %s52
    %s53 = sphi 0, %s50
    %s54 = sphi 0, %s53
    %s70 = sphi 0, %s54
    %s74 = sphi 0, %s74
    %s76 = sphi 0, %s74
    %s77 = sphi 0, %s76
    %s91 = sphi 0, %s77
    %s95 = sphi 0, %s95
    %s97 = sphi 0, %s95
    %s98 = sphi 0, %s97
    %s112 = sphi 0, %s98
    %s116 = sphi 0, %s116
    %s118 = sphi 0, %s116
    %s119 = sphi 0, %s118
    %s133 = sphi 0, %s119
    %s137 = sphi 0, %s137
    %s139 = sphi 0, %s137
    %s140 = sphi 0, %s139
    %s154 = sphi 0, %s140
    %s160 = sphi 0, %s162
    %s163 = sphi 0, %s160
    %s164 = sphi 0, %s163
    %s180 = sphi 0, %s164
    %s186 = sphi 0, %s188
    %s189 = sphi 0, %s186
    %s190 = sphi 0, %s189
    %s206 = sphi 0, %s190
  $region4: #{downsample_forward.3} parent=0 // loop_header_branch
    %17 = sbr.rel (%p15) target = $region8
  $region5: #{downsample_forward.3} parent=0 // loop_body
    %s19 = ssub.s32 %s14, 1
    %s20 = ssub.s32 %s14, 2
    %s21 = sadd.s32 %s14, 1
    %s22 = ssub.s32 %s14, %s21
    %p23 = scmp.eq.s32.totalorder %s22, 0
    %s25 = sadd.s32 %s24, 1
    %s26 = scalar_select %p23, %s24, %s25
    %p29 = pneg %p23
    %p30 = scmp.eq.s32.totalorder %s14, 1
    %p31 = por %p29, %p30
    %p32 = scmp.ne.s32.totalorder %s24, %s27
    %p33 = scmp.eq.s32.totalorder %s14, 0
    %p34 = por %p32, %p33
    %p35 = scmp.ne.s32.totalorder %s24, %s27
    %p36 = scmp.eq.s32.totalorder %s19, 1
    %p37 = por %p35, %p36
    %p38 = scmp.ne.s32.totalorder %s27, %s28
    %p39 = scmp.eq.s32.totalorder %s19, 0
    %p40 = por %p38, %p39
    %p41 = scmp.ne.s32.totalorder %s27, %s28
    %p42 = scmp.eq.s32.totalorder %s20, 1
    %p43 = por %p41, %p42
    %p45 = scmp.ne.s32.totalorder %s28, %s44
    %p46 = scmp.eq.s32.totalorder %s20, 0
    %p47 = por %p45, %p46
    %s48 = ssub.s32 %s14, %s21
    %p49 = scmp.eq.s32.totalorder %s48, 0
    %s51 = sadd.s32 %s50, 1
    %s52 = scalar_select %p49, %s50, %s51
    %p55 = pneg %p49
    %p56 = scmp.eq.s32.totalorder %s14, 1
    %p57 = por %p55, %p56
    %p58 = scmp.ne.s32.totalorder %s50, %s53
    %p59 = scmp.eq.s32.totalorder %s14, 0
    %p60 = por %p58, %p59
    %p61 = scmp.ne.s32.totalorder %s50, %s53
    %p62 = scmp.eq.s32.totalorder %s19, 1
    %p63 = por %p61, %p62
    %p64 = scmp.ne.s32.totalorder %s53, %s54
    %p65 = scmp.eq.s32.totalorder %s19, 0
    %p66 = por %p64, %p65
    %p67 = scmp.ne.s32.totalorder %s53, %s54
    %p68 = scmp.eq.s32.totalorder %s20, 1
    %p69 = por %p67, %p68
    %p71 = scmp.ne.s32.totalorder %s54, %s70
    %p72 = scmp.eq.s32.totalorder %s20, 0
    %p73 = por %p71, %p72
    %s75 = sadd.s32 %s74, 1
    %p78 = scmp.eq.s32.totalorder %s14, 1
    %p79 = scmp.ne.s32.totalorder %s74, %s76
    %p80 = scmp.eq.s32.totalorder %s14, 0
    %p81 = por %p79, %p80
    %p82 = scmp.ne.s32.totalorder %s74, %s76
    %p83 = scmp.eq.s32.totalorder %s19, 1
    %p84 = por %p82, %p83
    %p85 = scmp.ne.s32.totalorder %s76, %s77
    %p86 = scmp.eq.s32.totalorder %s19, 0
    %p87 = por %p85, %p86
    %p88 = scmp.ne.s32.totalorder %s76, %s77
    %p89 = scmp.eq.s32.totalorder %s20, 1
    %p90 = por %p88, %p89
    %p92 = scmp.ne.s32.totalorder %s77, %s91
    %p93 = scmp.eq.s32.totalorder %s20, 0
    %p94 = por %p92, %p93
    %s96 = sadd.s32 %s95, 1
    %p99 = scmp.eq.s32.totalorder %s14, 1
    %p100 = scmp.ne.s32.totalorder %s95, %s97
    %p101 = scmp.eq.s32.totalorder %s14, 0
    %p102 = por %p100, %p101
    %p103 = scmp.ne.s32.totalorder %s95, %s97
    %p104 = scmp.eq.s32.totalorder %s19, 1
    %p105 = por %p103, %p104
    %p106 = scmp.ne.s32.totalorder %s97, %s98
    %p107 = scmp.eq.s32.totalorder %s19, 0
    %p108 = por %p106, %p107
    %p109 = scmp.ne.s32.totalorder %s97, %s98
    %p110 = scmp.eq.s32.totalorder %s20, 1
    %p111 = por %p109, %p110
    %p113 = scmp.ne.s32.totalorder %s98, %s112
    %p114 = scmp.eq.s32.totalorder %s20, 0
    %p115 = por %p113, %p114
    %s117 = sadd.s32 %s116, 1
    %p120 = scmp.eq.s32.totalorder %s14, 1
    %p121 = scmp.ne.s32.totalorder %s116, %s118
    %p122 = scmp.eq.s32.totalorder %s14, 0
    %p123 = por %p121, %p122
    %p124 = scmp.ne.s32.totalorder %s116, %s118
    %p125 = scmp.eq.s32.totalorder %s19, 1
    %p126 = por %p124, %p125
    %p127 = scmp.ne.s32.totalorder %s118, %s119
    %p128 = scmp.eq.s32.totalorder %s19, 0
    %p129 = por %p127, %p128
    %p130 = scmp.ne.s32.totalorder %s118, %s119
    %p131 = scmp.eq.s32.totalorder %s20, 1
    %p132 = por %p130, %p131
    %p134 = scmp.ne.s32.totalorder %s119, %s133
    %p135 = scmp.eq.s32.totalorder %s20, 0
    %p136 = por %p134, %p135
    %s138 = sadd.s32 %s137, 1
    %p141 = scmp.eq.s32.totalorder %s14, 1
    %p142 = scmp.ne.s32.totalorder %s137, %s139
    %p143 = scmp.eq.s32.totalorder %s14, 0
    %p144 = por %p142, %p143
    %p145 = scmp.ne.s32.totalorder %s137, %s139
    %p146 = scmp.eq.s32.totalorder %s19, 1
    %p147 = por %p145, %p146
    %p148 = scmp.ne.s32.totalorder %s139, %s140
    %p149 = scmp.eq.s32.totalorder %s19, 0
    %p150 = por %p148, %p149
    %p151 = scmp.ne.s32.totalorder %s139, %s140
    %p152 = scmp.eq.s32.totalorder %s20, 1
    %p153 = por %p151, %p152
    %p155 = scmp.ne.s32.totalorder %s140, %s154
    %p156 = scmp.eq.s32.totalorder %s20, 0
    %p157 = por %p155, %p156
    %s158 = ssub.s32 %s14, %s21
    %p159 = scmp.eq.s32.totalorder %s158, 0
    %s161 = sadd.s32 %s160, 1
    %s162 = scalar_select %p159, %s160, %s161
    %p165 = pneg %p159
    %p166 = scmp.eq.s32.totalorder %s14, 1
    %p167 = por %p165, %p166
    %p168 = scmp.ne.s32.totalorder %s160, %s163
    %p169 = scmp.eq.s32.totalorder %s14, 0
    %p170 = por %p168, %p169
    %p171 = scmp.ne.s32.totalorder %s160, %s163
    %p172 = scmp.eq.s32.totalorder %s19, 1
    %p173 = por %p171, %p172
    %p174 = scmp.ne.s32.totalorder %s163, %s164
    %p175 = scmp.eq.s32.totalorder %s19, 0
    %p176 = por %p174, %p175
    %p177 = scmp.ne.s32.totalorder %s163, %s164
    %p178 = scmp.eq.s32.totalorder %s20, 1
    %p179 = por %p177, %p178
    %p181 = scmp.ne.s32.totalorder %s164, %s180
    %p182 = scmp.eq.s32.totalorder %s20, 0
    %p183 = por %p181, %p182
    %s184 = ssub.s32 %s14, %s21
    %p185 = scmp.eq.s32.totalorder %s184, 0
    %s187 = sadd.s32 %s186, 1
    %s188 = scalar_select %p185, %s186, %s187
    %p191 = pneg %p185
    %p192 = scmp.eq.s32.totalorder %s14, 1
    %p193 = por %p191, %p192
    %p194 = scmp.ne.s32.totalorder %s186, %s189
    %p195 = scmp.eq.s32.totalorder %s14, 0
    %p196 = por %p194, %p195
    %p197 = scmp.ne.s32.totalorder %s186, %s189
    %p198 = scmp.eq.s32.totalorder %s19, 1
    %p199 = por %p197, %p198
    %p200 = scmp.ne.s32.totalorder %s189, %s190
    %p201 = scmp.eq.s32.totalorder %s19, 0
    %p202 = por %p200, %p201
    %p203 = scmp.ne.s32.totalorder %s189, %s190
    %p204 = scmp.eq.s32.totalorder %s20, 1
    %p205 = por %p203, %p204
    %p207 = scmp.ne.s32.totalorder %s190, %s206
    %p208 = scmp.eq.s32.totalorder %s20, 0
    %p209 = por %p207, %p208
    %p210 = scmp.le.s32.totalorder 1, %s14
    %p211 = scmp.lt.s32.totalorder %s14, 3
    %p212 = pnand %p210, %p211
    %p213 = pneg %p212
    // Predicated region
    $region9: #{downsample_forward.3} parent=5 // pred_check
      _
    $region10: #{downsample_forward.3} parent=5 // pred_check_branch
      %215 = sbr.rel (%p212) target = $region12
    $region11: #{downsample_forward.3} parent=5 // pred_region
      %s216 = ssub.s32 %s14, 1
      // Predicated region
      $region13: #{downsample_forward.3} parent=11 // pred_check
        %p217 = pneg %p87
      $region14: #{downsample_forward.3} parent=11 // pred_check_branch
        %219 = sbr.rel (%p217) target = $region16
      $region15: #{downsample_forward.3} parent=11 // pred_region
        _
      $region16: #{downsample_forward.3} parent=11 // pred_fallthru
        _
      // Predicated region
      $region17: #{downsample_forward.3} parent=11 // pred_check
        %p220 = pneg %p108
      $region18: #{downsample_forward.3} parent=11 // pred_check_branch
        %222 = sbr.rel (%p220) target = $region20
      $region19: #{downsample_forward.3} parent=11 // pred_region
        _
      $region20: #{downsample_forward.3} parent=11 // pred_fallthru
        _
      // Predicated region
      $region21: #{downsample_forward.3} parent=11 // pred_check
        %p223 = pneg %p129
      $region22: #{downsample_forward.3} parent=11 // pred_check_branch
        %225 = sbr.rel (%p223) target = $region24
      $region23: #{downsample_forward.3} parent=11 // pred_region
        _
      $region24: #{downsample_forward.3} parent=11 // pred_fallthru
        _
      // Predicated region
      $region25: #{downsample_forward.3} parent=11 // pred_check
        %p226 = pneg %p150
      $region26: #{downsample_forward.3} parent=11 // pred_check_branch
        %228 = sbr.rel (%p226) target = $region28
      $region27: #{downsample_forward.3} parent=11 // pred_region
        _
      $region28: #{downsample_forward.3} parent=11 // pred_fallthru
        _
    $region12: #{downsample_forward.3} parent=5 // pred_fallthru
      _
    %p229 = scmp.lt.s32.totalorder %s14, 2
    // Predicated region
    $region29: #{downsample_forward.3} parent=5 // pred_check
      %p230 = pneg %p229
    $region30: #{downsample_forward.3} parent=5 // pred_check_branch
      %232 = sbr.rel (%p230) target = $region32
    $region31: #{downsample_forward.3} parent=5 // pred_region
      // Predicated region
      $region33: #{downsample_forward.3} parent=31 // pred_check
        %p233 = pneg %p34
      $region34: #{downsample_forward.3} parent=31 // pred_check_branch
        %235 = sbr.rel (%p233) target = $region36
      $region35: #{downsample_forward.3} parent=31 // pred_region
        %p236 = scmp.lt.s32.totalorder %s14, 1
        %s237 = scalar_select %p236, %s14, 1
        %s238 = smul.addr %s237, 4
        %s239 = scalar_lea.vmem %s0, %s238
      $region36: #{downsample_forward.3} parent=31 // pred_fallthru
        _
      // Predicated region
      $region37: #{downsample_forward.3} parent=31 // pred_check
        %p240 = pneg %p60
      $region38: #{downsample_forward.3} parent=31 // pred_check_branch
        %242 = sbr.rel (%p240) target = $region40
      $region39: #{downsample_forward.3} parent=31 // pred_region
        %p243 = scmp.lt.s32.totalorder %s14, 1
        %s244 = scalar_select %p243, %s14, 1
        %s245 = scalar_lea.vmem %s1, %s244
      $region40: #{downsample_forward.3} parent=31 // pred_fallthru
        _
    $region32: #{downsample_forward.3} parent=5 // pred_fallthru
      _
    %p246 = scmp.le.s32.totalorder 1, %s14
    %p247 = scmp.lt.s32.totalorder %s14, 3
    %p248 = pnand %p246, %p247
    %p249 = pneg %p248
    // Predicated region
    $region41: #{downsample_forward.3} parent=5 // pred_check
      _
    $region42: #{downsample_forward.3} parent=5 // pred_check_branch
      %251 = sbr.rel (%p248) target = $region44
    $region43: #{downsample_forward.3} parent=5 // pred_region
      %s252 = ssub.s32 %s14, 1
      %p253 = scmp.lt.s32.totalorder %s19, 1
      %s254 = scalar_select %p253, %s19, 1
      %s255 = smul.addr %s254, 4
      %s256 = scalar_lea.vmem %s0, %s255
      %p257 = pneg %p40
      %p258 = pneg %p37
      %p259 = scmp.lt.s32.totalorder %s19, 1
      %s260 = scalar_select %p259, %s19, 1
      %s261 = scalar_lea.vmem %s1, %s260
      %p262 = pneg %p66
      %p263 = pneg %p63
      %p264 = pneg %p87
      %p265 = pneg %p84
      %p266 = pneg %p108
      %p267 = pneg %p105
      %p268 = pneg %p129
      %p269 = pneg %p126
      %p270 = pneg %p150
      %p271 = pneg %p147
      %p272 = pneg %p176
      %p273 = pneg %p173
      %p274 = scmp.lt.s32.totalorder %s19, 1
      %s275 = scalar_select %p274, %s19, 1
      %s276 = smul.addr %s275, 2
      %s277 = smul.addr %s276, 8
      %s278 = scalar_lea.vmem %s6, %s277
      %p279 = pneg %p202
      %p280 = pneg %p199
      %p281 = scmp.lt.s32.totalorder %s19, 1
      %s282 = scalar_select %p281, %s19, 1
      %s283 = scalar_lea.vmem %s7, %s282
      %p284 = scmp.lt.s32.totalorder %s19, 1
      %s285 = scalar_select %p284, %s19, 1
      %s286 = smul.addr %s285, 4
      %s287 = scalar_lea.vmem %s0, %s286
      %p288 = scmp.lt.s32.totalorder %s19, 1
      %s289 = scalar_select %p288, %s19, 1
      %s290 = scalar_lea.vmem %s1, %s289
      %p291 = scmp.lt.s32.totalorder %s19, 1
      %s292 = scalar_select %p291, %s19, 1
      %s293 = smul.addr %s292, 2
      %s294 = smul.addr %s293, 8
      %s295 = scalar_lea.vmem %s6, %s294
      %p296 = scmp.lt.s32.totalorder %s19, 1
      %s297 = scalar_select %p296, %s19, 1
      %s298 = scalar_lea.vmem %s7, %s297
      %v299 = vld [vmem:[%s287] sm:$0xf]
      %v300 = vunpack.c.l.bf16 %v299
      %v301 = vld [vmem:[%s290] sm:$0x1]
      %v302 = vadd.f32 %v301, 0.0
      %v303 = vld [vmem:[%s2] sm:$0xff]
      %v304 = vld [vmem:[%s2 + $0x8] sm:$0xff]
      %v305 = vadd.f32 %v302, 0.0
      %s306 = scalar_lea.vmem %s2, 16
      %v307 = vld [vmem:[%s306] sm:$0xff]
      %v308 = vld [vmem:[%s306 + $0x8] sm:$0xff]
      %310 = vrot.lane.b32.xlu0 %v300, 127
      %v311 = vpop.permute.xlu0 %310
      %vm313 = vcmask 64512
      %v315 = vsel %vm313, %v307, 0
      %v318 = vsel %vm313, %v308, 0
      %320 = vmatprep.subr.mxu0 0.0
      %321 = vmatpush1.msra.mxu0 %v311
      %322 = vmatprep.subr.mxu0 0.0
      %323 = vmatpush1.msra.mxu0 0.0
      %324 = vmatprep.subr.mxu0 0.0
      %325 = vmatpush1.msra.mxu0 0.0
      %326 = vmatprep.subr.mxu0 0.0
      %327 = vmatpush1.msra.mxu0 0.0
      %328 = vmatprep.subr.mxu0 0.0
      %329 = vmatpush1.msra.mxu0 0.0
      %330 = vmatprep.subr.mxu0 0.0
      %331 = vmatpush1.msra.mxu0 0.0
      %332 = vmatprep.subr.mxu0 0.0
      %333 = vmatpush1.msra.mxu0 0.0
      %334 = vmatprep.subr.mxu0 0.0
      %335 = vmatpush1.msra.mxu0 0.0
      %336 = vmatprep.subr.mxu0 0.0
      %337 = vmatpush1.msra.mxu0 0.0
      %338 = vmatprep.subr.mxu0 0.0
      %339 = vmatpush1.msra.mxu0 0.0
      %340 = vmatprep.subr.mxu0 0.0
      %341 = vmatpush1.msra.mxu0 0.0
      %342 = vmatprep.subr.mxu0 0.0
      %343 = vmatpush1.msra.mxu0 0.0
      %344 = vmatprep.subr.mxu0 0.0
      %345 = vmatpush1.msra.mxu0 0.0
      %346 = vmatprep.subr.mxu0 0.0
      %347 = vmatpush1.msra.mxu0 0.0
      %348 = vmatprep.subr.mxu0 0.0
      %349 = vmatpush1.msra.mxu0 0.0
      %350 = vmatprep.subr.mxu0 0.0
      %351 = vmatpush1.msra.mxu0 0.0
      %352 = vmatprep.subr.mxu0 0.0
      %353 = vmatpush1.msra.mxu0 0.0
      %354 = vmatprep.subr.mxu0 0.0
      %355 = vmatpush1.msra.mxu0 0.0
      %356 = vmatprep.subr.mxu0 0.0
      %357 = vmatpush1.msra.mxu0 0.0
      %358 = vmatprep.subr.mxu0 0.0
      %359 = vmatpush1.msra.mxu0 0.0
      %360 = vmatprep.subr.mxu0 0.0
      %361 = vmatpush1.msra.mxu0 0.0
      %362 = vmatprep.subr.mxu0 0.0
      %363 = vmatpush1.msra.mxu0 0.0
      %364 = vmatprep.subr.mxu0 0.0
      %365 = vmatpush1.msra.mxu0 0.0
      %366 = vmatprep.subr.mxu0 0.0
      %367 = vmatpush1.msra.mxu0 0.0
      %368 = vmatprep.subr.mxu0 0.0
      %369 = vmatpush1.msra.mxu0 0.0
      %370 = vmatprep.subr.mxu0 0.0
      %371 = vmatpush1.msra.mxu0 0.0
      %372 = vmatprep.subr.mxu0 0.0
      %373 = vmatpush1.msra.mxu0 0.0
      %374 = vmatprep.subr.mxu0 0.0
      %375 = vmatpush1.msra.mxu0 0.0
      %376 = vmatprep.subr.mxu0 0.0
      %377 = vmatpush1.msra.mxu0 0.0
      %378 = vmatprep.subr.mxu0 0.0
      %379 = vmatpush1.msra.mxu0 0.0
      %380 = vmatprep.subr.mxu0 0.0
      %381 = vmatpush1.msra.mxu0 0.0
      %382 = vmatprep.subr.mxu0 0.0
      %383 = vmatpush1.msra.mxu0 0.0
      %384 = vmatprep.mubr.f32.mxu0 0.0
      %385 = vmatmul.mubr.f32.gmra.mrb[0].mxu0 %v315
      %v386 = vpop.f32.mrb[0].mxu0
      %v387 = vadd.f32 0.0, %v386
      %v388 = vpop.f32.mrb[0].mxu0
      %389 = vmatprep.mubr.f32.mxu0 0.0
      %390 = vmatmul.mubr.f32.gmra.mrb[0].mxu0 %v318
      %v391 = vpop.f32.mrb[0].mxu0
      %v392 = vadd.f32 0.0, %v391
      %v393 = vpop.f32.mrb[0].mxu0
      %394 = vdwg.mxu0
      %v396 = vsel %vm313, %v303, 0
      %v399 = vsel %vm313, %v304, 0
      %401 = vmatprep.subr.mxu0 0.0
      %402 = vmatpush1.msra.mxu0 %v300
      %403 = vmatprep.subr.mxu0 0.0
      %404 = vmatpush1.msra.mxu0 0.0
      %405 = vmatprep.subr.mxu0 0.0
      %406 = vmatpush1.msra.mxu0 0.0
      %407 = vmatprep.subr.mxu0 0.0
      %408 = vmatpush1.msra.mxu0 0.0
      %409 = vmatprep.subr.mxu0 0.0
      %410 = vmatpush1.msra.mxu0 0.0
      %411 = vmatprep.subr.mxu0 0.0
      %412 = vmatpush1.msra.mxu0 0.0
      %413 = vmatprep.subr.mxu0 0.0
      %414 = vmatpush1.msra.mxu0 0.0
      %415 = vmatprep.subr.mxu0 0.0
      %416 = vmatpush1.msra.mxu0 0.0
      %417 = vmatprep.subr.mxu0 0.0
      %418 = vmatpush1.msra.mxu0 0.0
      %419 = vmatprep.subr.mxu0 0.0
      %420 = vmatpush1.msra.mxu0 0.0
      %421 = vmatprep.subr.mxu0 0.0
      %422 = vmatpush1.msra.mxu0 0.0
      %423 = vmatprep.subr.mxu0 0.0
      %424 = vmatpush1.msra.mxu0 0.0
      %425 = vmatprep.subr.mxu0 0.0
      %426 = vmatpush1.msra.mxu0 0.0
      %427 = vmatprep.subr.mxu0 0.0
      %428 = vmatpush1.msra.mxu0 0.0
      %429 = vmatprep.subr.mxu0 0.0
      %430 = vmatpush1.msra.mxu0 0.0
      %431 = vmatprep.subr.mxu0 0.0
      %432 = vmatpush1.msra.mxu0 0.0
      %433 = vmatprep.subr.mxu0 0.0
      %434 = vmatpush1.msra.mxu0 0.0
      %435 = vmatprep.subr.mxu0 0.0
      %436 = vmatpush1.msra.mxu0 0.0
      %437 = vmatprep.subr.mxu0 0.0
      %438 = vmatpush1.msra.mxu0 0.0
      %439 = vmatprep.subr.mxu0 0.0
      %440 = vmatpush1.msra.mxu0 0.0
      %441 = vmatprep.subr.mxu0 0.0
      %442 = vmatpush1.msra.mxu0 0.0
      %443 = vmatprep.subr.mxu0 0.0
      %444 = vmatpush1.msra.mxu0 0.0
      %445 = vmatprep.subr.mxu0 0.0
      %446 = vmatpush1.msra.mxu0 0.0
      %447 = vmatprep.subr.mxu0 0.0
      %448 = vmatpush1.msra.mxu0 0.0
      %449 = vmatprep.subr.mxu0 0.0
      %450 = vmatpush1.msra.mxu0 0.0
      %451 = vmatprep.subr.mxu0 0.0
      %452 = vmatpush1.msra.mxu0 0.0
      %453 = vmatprep.subr.mxu0 0.0
      %454 = vmatpush1.msra.mxu0 0.0
      %455 = vmatprep.subr.mxu0 0.0
      %456 = vmatpush1.msra.mxu0 0.0
      %457 = vmatprep.subr.mxu0 0.0
      %458 = vmatpush1.msra.mxu0 0.0
      %459 = vmatprep.subr.mxu0 0.0
      %460 = vmatpush1.msra.mxu0 0.0
      %461 = vmatprep.subr.mxu0 0.0
      %462 = vmatpush1.msra.mxu0 0.0
      %463 = vmatprep.subr.mxu0 0.0
      %464 = vmatpush1.msra.mxu0 0.0
      %465 = vmatprep.mubr.f32.mxu0 0.0
      %466 = vmatmul.mubr.f32.gmra.mrb[0].mxu0 %v396
      %v467 = vpop.f32.mrb[0].mxu0
      %v468 = vadd.f32 %v387, %v467
      %v469 = vpop.f32.mrb[0].mxu0
      %470 = vmatprep.mubr.f32.mxu0 0.0
      %471 = vmatmul.mubr.f32.gmra.mrb[0].mxu0 %v399
      %v472 = vpop.f32.mrb[0].mxu0
      %v473 = vadd.f32 %v392, %v472
      %v474 = vpop.f32.mrb[0].mxu0
      %475 = vdwg.mxu0
      %477 = vrot.lane.b32.xlu0 %v302, 127
      %v478 = vpop.permute.xlu0 %477
      %v480 = vadd.f32 %v305, %v478
      %s481 = scalar_lea.vmem %s2, 32
      %v482 = vld [vmem:[%s481] sm:$0xff]
      %v483 = vld [vmem:[%s481 + $0x8] sm:$0xff]
      %484 = vrot.lane.b32.xlu0 %v300, 126
      %v485 = vpop.permute.xlu0 %484
      %v488 = vsel %vm313, %v482, 0
      %v491 = vsel %vm313, %v483, 0
      %493 = vmatprep.subr.mxu0 0.0
      %494 = vmatpush1.msra.mxu0 %v485
      %495 = vmatprep.subr.mxu0 0.0
      %496 = vmatpush1.msra.mxu0 0.0
      %497 = vmatprep.subr.mxu0 0.0
      %498 = vmatpush1.msra.mxu0 0.0
      %499 = vmatprep.subr.mxu0 0.0
      %500 = vmatpush1.msra.mxu0 0.0
      %501 = vmatprep.subr.mxu0 0.0
      %502 = vmatpush1.msra.mxu0 0.0
      %503 = vmatprep.subr.mxu0 0.0
      %504 = vmatpush1.msra.mxu0 0.0
      %505 = vmatprep.subr.mxu0 0.0
      %506 = vmatpush1.msra.mxu0 0.0
      %507 = vmatprep.subr.mxu0 0.0
      %508 = vmatpush1.msra.mxu0 0.0
      %509 = vmatprep.subr.mxu0 0.0
      %510 = vmatpush1.msra.mxu0 0.0
      %511 = vmatprep.subr.mxu0 0.0
      %512 = vmatpush1.msra.mxu0 0.0
      %513 = vmatprep.subr.mxu0 0.0
      %514 = vmatpush1.msra.mxu0 0.0
      %515 = vmatprep.subr.mxu0 0.0
      %516 = vmatpush1.msra.mxu0 0.0
      %517 = vmatprep.subr.mxu0 0.0
      %518 = vmatpush1.msra.mxu0 0.0
      %519 = vmatprep.subr.mxu0 0.0
      %520 = vmatpush1.msra.mxu0 0.0
      %521 = vmatprep.subr.mxu0 0.0
      %522 = vmatpush1.msra.mxu0 0.0
      %523 = vmatprep.subr.mxu0 0.0
      %524 = vmatpush1.msra.mxu0 0.0
      %525 = vmatprep.subr.mxu0 0.0
      %526 = vmatpush1.msra.mxu0 0.0
      %527 = vmatprep.subr.mxu0 0.0
      %528 = vmatpush1.msra.mxu0 0.0
      %529 = vmatprep.subr.mxu0 0.0
      %530 = vmatpush1.msra.mxu0 0.0
      %531 = vmatprep.subr.mxu0 0.0
      %532 = vmatpush1.msra.mxu0 0.0
      %533 = vmatprep.subr.mxu0 0.0
      %534 = vmatpush1.msra.mxu0 0.0
      %535 = vmatprep.subr.mxu0 0.0
      %536 = vmatpush1.msra.mxu0 0.0
      %537 = vmatprep.subr.mxu0 0.0
      %538 = vmatpush1.msra.mxu0 0.0
      %539 = vmatprep.subr.mxu0 0.0
      %540 = vmatpush1.msra.mxu0 0.0
      %541 = vmatprep.subr.mxu0 0.0
      %542 = vmatpush1.msra.mxu0 0.0
      %543 = vmatprep.subr.mxu0 0.0
      %544 = vmatpush1.msra.mxu0 0.0
      %545 = vmatprep.subr.mxu0 0.0
      %546 = vmatpush1.msra.mxu0 0.0
      %547 = vmatprep.subr.mxu0 0.0
      %548 = vmatpush1.msra.mxu0 0.0
      %549 = vmatprep.subr.mxu0 0.0
      %550 = vmatpush1.msra.mxu0 0.0
      %551 = vmatprep.subr.mxu0 0.0
      %552 = vmatpush1.msra.mxu0 0.0
      %553 = vmatprep.subr.mxu0 0.0
      %554 = vmatpush1.msra.mxu0 0.0
      %555 = vmatprep.subr.mxu0 0.0
      %556 = vmatpush1.msra.mxu0 0.0
      %557 = vmatprep.mubr.f32.mxu0 0.0
      %558 = vmatmul.mubr.f32.gmra.mrb[0].mxu0 %v488
      %v559 = vpop.f32.mrb[0].mxu0
      %v560 = vadd.f32 0.0, %v559
      %v561 = vpop.f32.mrb[0].mxu0
      %562 = vmatprep.mubr.f32.mxu0 0.0
      %563 = vmatmul.mubr.f32.gmra.mrb[0].mxu0 %v491
      %v564 = vpop.f32.mrb[0].mxu0
      %v565 = vadd.f32 0.0, %v564
      %v566 = vpop.f32.mrb[0].mxu0
      %567 = vdwg.mxu0
      %v568 = vadd.f32 %v468, %v560
      %v569 = vadd.f32 %v473, %v565
      %570 = vrot.lane.b32.xlu0 %v302, 126
      %v571 = vpop.permute.xlu0 %570
      %v573 = vadd.f32 %v480, %v571
      %s574 = scalar_lea.vmem %s2, 48
      %v575 = vld [vmem:[%s574] sm:$0xff]
      %v576 = vld [vmem:[%s574 + $0x8] sm:$0xff]
      %577 = vrot.lane.b32.xlu0 %v300, 118
      %v578 = vpop.permute.xlu0 %577
      %v581 = vsel %vm313, %v575, 0
      %v584 = vsel %vm313, %v576, 0
      %586 = vmatprep.subr.mxu0 0.0
      %587 = vmatpush1.msra.mxu0 %v578
      %588 = vmatprep.subr.mxu0 0.0
      %589 = vmatpush1.msra.mxu0 0.0
      %590 = vmatprep.subr.mxu0 0.0
      %591 = vmatpush1.msra.mxu0 0.0
      %592 = vmatprep.subr.mxu0 0.0
      %593 = vmatpush1.msra.mxu0 0.0
      %594 = vmatprep.subr.mxu0 0.0
      %595 = vmatpush1.msra.mxu0 0.0
      %596 = vmatprep.subr.mxu0 0.0
      %597 = vmatpush1.msra.mxu0 0.0
      %598 = vmatprep.subr.mxu0 0.0
      %599 = vmatpush1.msra.mxu0 0.0
      %600 = vmatprep.subr.mxu0 0.0
      %601 = vmatpush1.msra.mxu0 0.0
      %602 = vmatprep.subr.mxu0 0.0
      %603 = vmatpush1.msra.mxu0 0.0
      %604 = vmatprep.subr.mxu0 0.0
      %605 = vmatpush1.msra.mxu0 0.0
      %606 = vmatprep.subr.mxu0 0.0
      %607 = vmatpush1.msra.mxu0 0.0
      %608 = vmatprep.subr.mxu0 0.0
      %609 = vmatpush1.msra.mxu0 0.0
      %610 = vmatprep.subr.mxu0 0.0
      %611 = vmatpush1.msra.mxu0 0.0
      %612 = vmatprep.subr.mxu0 0.0
      %613 = vmatpush1.msra.mxu0 0.0
      %614 = vmatprep.subr.mxu0 0.0
      %615 = vmatpush1.msra.mxu0 0.0
      %616 = vmatprep.subr.mxu0 0.0
      %617 = vmatpush1.msra.mxu0 0.0
      %618 = vmatprep.subr.mxu0 0.0
      %619 = vmatpush1.msra.mxu0 0.0
      %620 = vmatprep.subr.mxu0 0.0
      %621 = vmatpush1.msra.mxu0 0.0
      %622 = vmatprep.subr.mxu0 0.0
      %623 = vmatpush1.msra.mxu0 0.0
      %624 = vmatprep.subr.mxu0 0.0
      %625 = vmatpush1.msra.mxu0 0.0
      %626 = vmatprep.subr.mxu0 0.0
      %627 = vmatpush1.msra.mxu0 0.0
      %628 = vmatprep.subr.mxu0 0.0
      %629 = vmatpush1.msra.mxu0 0.0
      %630 = vmatprep.subr.mxu0 0.0
      %631 = vmatpush1.msra.mxu0 0.0
      %632 = vmatprep.subr.mxu0 0.0
      %633 = vmatpush1.msra.mxu0 0.0
      %634 = vmatprep.subr.mxu0 0.0
      %635 = vmatpush1.msra.mxu0 0.0
      %636 = vmatprep.subr.mxu0 0.0
      %637 = vmatpush1.msra.mxu0 0.0
      %638 = vmatprep.subr.mxu0 0.0
      %639 = vmatpush1.msra.mxu0 0.0
      %640 = vmatprep.subr.mxu0 0.0
      %641 = vmatpush1.msra.mxu0 0.0
      %642 = vmatprep.subr.mxu0 0.0
      %643 = vmatpush1.msra.mxu0 0.0
      %644 = vmatprep.subr.mxu0 0.0
      %645 = vmatpush1.msra.mxu0 0.0
      %646 = vmatprep.subr.mxu0 0.0
      %647 = vmatpush1.msra.mxu0 0.0
      %648 = vmatprep.subr.mxu0 0.0
      %649 = vmatpush1.msra.mxu0 0.0
      %650 = vmatprep.mubr.f32.mxu0 0.0
      %651 = vmatmul.mubr.f32.gmra.mrb[0].mxu0 %v581
      %v652 = vpop.f32.mrb[0].mxu0
      %v653 = vadd.f32 0.0, %v652
      %v654 = vpop.f32.mrb[0].mxu0
      %655 = vmatprep.mubr.f32.mxu0 0.0
      %656 = vmatmul.mubr.f32.gmra.mrb[0].mxu0 %v584
      %v657 = vpop.f32.mrb[0].mxu0
      %v658 = vadd.f32 0.0, %v657
      %v659 = vpop.f32.mrb[0].mxu0
      %660 = vdwg.mxu0
      %v661 = vadd.f32 %v568, %v653
      %v662 = vadd.f32 %v569, %v658
      %663 = vrot.lane.b32.xlu0 %v302, 118
      %v664 = vpop.permute.xlu0 %663
      %v666 = vadd.f32 %v573, %v664
      %s667 = scalar_lea.vmem %s2, 64
      %v668 = vld [vmem:[%s667] sm:$0xff]
      %v669 = vld [vmem:[%s667 + $0x8] sm:$0xff]
      %670 = vrot.lane.b32.xlu0 %v300, 117
      %v671 = vpop.permute.xlu0 %670
      %v674 = vsel %vm313, %v668, 0
      %v677 = vsel %vm313, %v669, 0
      %679 = vmatprep.subr.mxu0 0.0
      %680 = vmatpush1.msra.mxu0 %v671
      %681 = vmatprep.subr.mxu0 0.0
      %682 = vmatpush1.msra.mxu0 0.0
      %683 = vmatprep.subr.mxu0 0.0
      %684 = vmatpush1.msra.mxu0 0.0
      %685 = vmatprep.subr.mxu0 0.0
      %686 = vmatpush1.msra.mxu0 0.0
      %687 = vmatprep.subr.mxu0 0.0
      %688 = vmatpush1.msra.mxu0 0.0
      %689 = vmatprep.subr.mxu0 0.0
      %690 = vmatpush1.msra.mxu0 0.0
      %691 = vmatprep.subr.mxu0 0.0
      %692 = vmatpush1.msra.mxu0 0.0
      %693 = vmatprep.subr.mxu0 0.0
      %694 = vmatpush1.msra.mxu0 0.0
      %695 = vmatprep.subr.mxu0 0.0
      %696 = vmatpush1.msra.mxu0 0.0
      %697 = vmatprep.subr.mxu0 0.0
      %698 = vmatpush1.msra.mxu0 0.0
      %699 = vmatprep.subr.mxu0 0.0
      %700 = vmatpush1.msra.mxu0 0.0
      %701 = vmatprep.subr.mxu0 0.0
      %702 = vmatpush1.msra.mxu0 0.0
      %703 = vmatprep.subr.mxu0 0.0
      %704 = vmatpush1.msra.mxu0 0.0
      %705 = vmatprep.subr.mxu0 0.0
      %706 = vmatpush1.msra.mxu0 0.0
      %707 = vmatprep.subr.mxu0 0.0
      %708 = vmatpush1.msra.mxu0 0.0
      %709 = vmatprep.subr.mxu0 0.0
      %710 = vmatpush1.msra.mxu0 0.0
      %711 = vmatprep.subr.mxu0 0.0
      %712 = vmatpush1.msra.mxu0 0.0
      %713 = vmatprep.subr.mxu0 0.0
      %714 = vmatpush1.msra.mxu0 0.0
      %715 = vmatprep.subr.mxu0 0.0
      %716 = vmatpush1.msra.mxu0 0.0
      %717 = vmatprep.subr.mxu0 0.0
      %718 = vmatpush1.msra.mxu0 0.0
      %719 = vmatprep.subr.mxu0 0.0
      %720 = vmatpush1.msra.mxu0 0.0
      %721 = vmatprep.subr.mxu0 0.0
      %722 = vmatpush1.msra.mxu0 0.0
      %723 = vmatprep.subr.mxu0 0.0
      %724 = vmatpush1.msra.mxu0 0.0
      %725 = vmatprep.subr.mxu0 0.0
      %726 = vmatpush1.msra.mxu0 0.0
      %727 = vmatprep.subr.mxu0 0.0
      %728 = vmatpush1.msra.mxu0 0.0
      %729 = vmatprep.subr.mxu0 0.0
      %730 = vmatpush1.msra.mxu0 0.0
      %731 = vmatprep.subr.mxu0 0.0
      %732 = vmatpush1.msra.mxu0 0.0
      %733 = vmatprep.subr.mxu0 0.0
      %734 = vmatpush1.msra.mxu0 0.0
      %735 = vmatprep.subr.mxu0 0.0
      %736 = vmatpush1.msra.mxu0 0.0
      %737 = vmatprep.subr.mxu0 0.0
      %738 = vmatpush1.msra.mxu0 0.0
      %739 = vmatprep.subr.mxu0 0.0
      %740 = vmatpush1.msra.mxu0 0.0
      %741 = vmatprep.subr.mxu0 0.0
      %742 = vmatpush1.msra.mxu0 0.0
      %743 = vmatprep.mubr.f32.mxu0 0.0
      %744 = vmatmul.mubr.f32.gmra.mrb[0].mxu0 %v674
      %v745 = vpop.f32.mrb[0].mxu0
      %v746 = vadd.f32 0.0, %v745
      %v747 = vpop.f32.mrb[0].mxu0
      %748 = vmatprep.mubr.f32.mxu0 0.0
      %749 = vmatmul.mubr.f32.gmra.mrb[0].mxu0 %v677
      %v750 = vpop.f32.mrb[0].mxu0
      %v751 = vadd.f32 0.0, %v750
      %v752 = vpop.f32.mrb[0].mxu0
      %753 = vdwg.mxu0
      %v754 = vadd.f32 %v661, %v746
      %v755 = vadd.f32 %v662, %v751
      %756 = vrot.lane.b32.xlu0 %v302, 117
      %v757 = vpop.permute.xlu0 %756
      %v759 = vadd.f32 %v666, %v757
      %s760 = scalar_lea.vmem %s2, 80
      %v761 = vld [vmem:[%s760] sm:$0xff]
      %v762 = vld [vmem:[%s760 + $0x8] sm:$0xff]
      %763 = vrot.lane.b32.xlu0 %v300, 116
      %v764 = vpop.permute.xlu0 %763
      %v767 = vsel %vm313, %v761, 0
      %v770 = vsel %vm313, %v762, 0
      %772 = vmatprep.subr.mxu0 0.0
      %773 = vmatpush1.msra.mxu0 %v764
      %774 = vmatprep.subr.mxu0 0.0
      %775 = vmatpush1.msra.mxu0 0.0
      %776 = vmatprep.subr.mxu0 0.0
      %777 = vmatpush1.msra.mxu0 0.0
      %778 = vmatprep.subr.mxu0 0.0
      %779 = vmatpush1.msra.mxu0 0.0
      %780 = vmatprep.subr.mxu0 0.0
      %781 = vmatpush1.msra.mxu0 0.0
      %782 = vmatprep.subr.mxu0 0.0
      %783 = vmatpush1.msra.mxu0 0.0
      %784 = vmatprep.subr.mxu0 0.0
      %785 = vmatpush1.msra.mxu0 0.0
      %786 = vmatprep.subr.mxu0 0.0
      %787 = vmatpush1.msra.mxu0 0.0
      %788 = vmatprep.subr.mxu0 0.0
      %789 = vmatpush1.msra.mxu0 0.0
      %790 = vmatprep.subr.mxu0 0.0
      %791 = vmatpush1.msra.mxu0 0.0
      %792 = vmatprep.subr.mxu0 0.0
      %793 = vmatpush1.msra.mxu0 0.0
      %794 = vmatprep.subr.mxu0 0.0
      %795 = vmatpush1.msra.mxu0 0.0
      %796 = vmatprep.subr.mxu0 0.0
      %797 = vmatpush1.msra.mxu0 0.0
      %798 = vmatprep.subr.mxu0 0.0
      %799 = vmatpush1.msra.mxu0 0.0
      %800 = vmatprep.subr.mxu0 0.0
      %801 = vmatpush1.msra.mxu0 0.0
      %802 = vmatprep.subr.mxu0 0.0
      %803 = vmatpush1.msra.mxu0 0.0
      %804 = vmatprep.subr.mxu0 0.0
      %805 = vmatpush1.msra.mxu0 0.0
      %806 = vmatprep.subr.mxu0 0.0
      %807 = vmatpush1.msra.mxu0 0.0
      %808 = vmatprep.subr.mxu0 0.0
      %809 = vmatpush1.msra.mxu0 0.0
      %810 = vmatprep.subr.mxu0 0.0
      %811 = vmatpush1.msra.mxu0 0.0
      %812 = vmatprep.subr.mxu0 0.0
      %813 = vmatpush1.msra.mxu0 0.0
      %814 = vmatprep.subr.mxu0 0.0
      %815 = vmatpush1.msra.mxu0 0.0
      %816 = vmatprep.subr.mxu0 0.0
      %817 = vmatpush1.msra.mxu0 0.0
      %818 = vmatprep.subr.mxu0 0.0
      %819 = vmatpush1.msra.mxu0 0.0
      %820 = vmatprep.subr.mxu0 0.0
      %821 = vmatpush1.msra.mxu0 0.0
      %822 = vmatprep.subr.mxu0 0.0
      %823 = vmatpush1.msra.mxu0 0.0
      %824 = vmatprep.subr.mxu0 0.0
      %825 = vmatpush1.msra.mxu0 0.0
      %826 = vmatprep.subr.mxu0 0.0
      %827 = vmatpush1.msra.mxu0 0.0
      %828 = vmatprep.subr.mxu0 0.0
      %829 = vmatpush1.msra.mxu0 0.0
      %830 = vmatprep.subr.mxu0 0.0
      %831 = vmatpush1.msra.mxu0 0.0
      %832 = vmatprep.subr.mxu0 0.0
      %833 = vmatpush1.msra.mxu0 0.0
      %834 = vmatprep.subr.mxu0 0.0
      %835 = vmatpush1.msra.mxu0 0.0
      %836 = vmatprep.mubr.f32.mxu0 0.0
      %837 = vmatmul.mubr.f32.gmra.mrb[0].mxu0 %v767
      %v838 = vpop.f32.mrb[0].mxu0
      %v839 = vadd.f32 0.0, %v838
      %v840 = vpop.f32.mrb[0].mxu0
      %841 = vmatprep.mubr.f32.mxu0 0.0
      %842 = vmatmul.mubr.f32.gmra.mrb[0].mxu0 %v770
      %v843 = vpop.f32.mrb[0].mxu0
      %v844 = vadd.f32 0.0, %v843
      %v845 = vpop.f32.mrb[0].mxu0
      %846 = vdwg.mxu0
      %v847 = vadd.f32 %v754, %v839
      %v848 = vadd.f32 %v755, %v844
      %849 = vrot.lane.b32.xlu0 %v302, 116
      %v850 = vpop.permute.xlu0 %849
      %v852 = vadd.f32 %v759, %v850
      %s853 = scalar_lea.vmem %s2, 96
      %v854 = vld [vmem:[%s853] sm:$0xff]
      %v855 = vld [vmem:[%s853 + $0x8] sm:$0xff]
      %856 = vrot.lane.b32.xlu0 %v300, 108
      %v857 = vpop.permute.xlu0 %856
      %v860 = vsel %vm313, %v854, 0
      %v863 = vsel %vm313, %v855, 0
      %865 = vmatprep.subr.mxu0 0.0
      %866 = vmatpush1.msra.mxu0 %v857
      %867 = vmatprep.subr.mxu0 0.0
      %868 = vmatpush1.msra.mxu0 0.0
      %869 = vmatprep.subr.mxu0 0.0
      %870 = vmatpush1.msra.mxu0 0.0
      %871 = vmatprep.subr.mxu0 0.0
      %872 = vmatpush1.msra.mxu0 0.0
      %873 = vmatprep.subr.mxu0 0.0
      %874 = vmatpush1.msra.mxu0 0.0
      %875 = vmatprep.subr.mxu0 0.0
      %876 = vmatpush1.msra.mxu0 0.0
      %877 = vmatprep.subr.mxu0 0.0
      %878 = vmatpush1.msra.mxu0 0.0
      %879 = vmatprep.subr.mxu0 0.0
      %880 = vmatpush1.msra.mxu0 0.0
      %881 = vmatprep.subr.mxu0 0.0
      %882 = vmatpush1.msra.mxu0 0.0
      %883 = vmatprep.subr.mxu0 0.0
      %884 = vmatpush1.msra.mxu0 0.0
      %885 = vmatprep.subr.mxu0 0.0
      %886 = vmatpush1.msra.mxu0 0.0
      %887 = vmatprep.subr.mxu0 0.0
      %888 = vmatpush1.msra.mxu0 0.0
      %889 = vmatprep.subr.mxu0 0.0
      %890 = vmatpush1.msra.mxu0 0.0
      %891 = vmatprep.subr.mxu0 0.0
      %892 = vmatpush1.msra.mxu0 0.0
      %893 = vmatprep.subr.mxu0 0.0
      %894 = vmatpush1.msra.mxu0 0.0
      %895 = vmatprep.subr.mxu0 0.0
      %896 = vmatpush1.msra.mxu0 0.0
      %897 = vmatprep.subr.mxu0 0.0
      %898 = vmatpush1.msra.mxu0 0.0
      %899 = vmatprep.subr.mxu0 0.0
      %900 = vmatpush1.msra.mxu0 0.0
      %901 = vmatprep.subr.mxu0 0.0
      %902 = vmatpush1.msra.mxu0 0.0
      %903 = vmatprep.subr.mxu0 0.0
      %904 = vmatpush1.msra.mxu0 0.0
      %905 = vmatprep.subr.mxu0 0.0
      %906 = vmatpush1.msra.mxu0 0.0
      %907 = vmatprep.subr.mxu0 0.0
      %908 = vmatpush1.msra.mxu0 0.0
      %909 = vmatprep.subr.mxu0 0.0
      %910 = vmatpush1.msra.mxu0 0.0
      %911 = vmatprep.subr.mxu0 0.0
      %912 = vmatpush1.msra.mxu0 0.0
      %913 = vmatprep.subr.mxu0 0.0
      %914 = vmatpush1.msra.mxu0 0.0
      %915 = vmatprep.subr.mxu0 0.0
      %916 = vmatpush1.msra.mxu0 0.0
      %917 = vmatprep.subr.mxu0 0.0
      %918 = vmatpush1.msra.mxu0 0.0
      %919 = vmatprep.subr.mxu0 0.0
      %920 = vmatpush1.msra.mxu0 0.0
      %921 = vmatprep.subr.mxu0 0.0
      %922 = vmatpush1.msra.mxu0 0.0
      %923 = vmatprep.subr.mxu0 0.0
      %924 = vmatpush1.msra.mxu0 0.0
      %925 = vmatprep.subr.mxu0 0.0
      %926 = vmatpush1.msra.mxu0 0.0
      %927 = vmatprep.subr.mxu0 0.0
      %928 = vmatpush1.msra.mxu0 0.0
      %929 = vmatprep.mubr.f32.mxu0 0.0
      %930 = vmatmul.mubr.f32.gmra.mrb[0].mxu0 %v860
      %v931 = vpop.f32.mrb[0].mxu0
      %v932 = vadd.f32 0.0, %v931
      %v933 = vpop.f32.mrb[0].mxu0
      %934 = vmatprep.mubr.f32.mxu0 0.0
      %935 = vmatmul.mubr.f32.gmra.mrb[0].mxu0 %v863
      %v936 = vpop.f32.mrb[0].mxu0
      %v937 = vadd.f32 0.0, %v936
      %v938 = vpop.f32.mrb[0].mxu0
      %939 = vdwg.mxu0
      %v940 = vadd.f32 %v847, %v932
      %v941 = vadd.f32 %v848, %v937
      %942 = vrot.lane.b32.xlu0 %v302, 108
      %v943 = vpop.permute.xlu0 %942
      %v945 = vadd.f32 %v852, %v943
      %s946 = scalar_lea.vmem %s2, 112
      %v947 = vld [vmem:[%s946] sm:$0xff]
      %v948 = vld [vmem:[%s946 + $0x8] sm:$0xff]
      %949 = vrot.lane.b32.xlu0 %v300, 107
      %v950 = vpop.permute.xlu0 %949
      %v953 = vsel %vm313, %v947, 0
      %v956 = vsel %vm313, %v948, 0
      %958 = vmatprep.subr.mxu0 0.0
      %959 = vmatpush1.msra.mxu0 %v950
      %960 = vmatprep.subr.mxu0 0.0
      %961 = vmatpush1.msra.mxu0 0.0
      %962 = vmatprep.subr.mxu0 0.0
      %963 = vmatpush1.msra.mxu0 0.0
      %964 = vmatprep.subr.mxu0 0.0
      %965 = vmatpush1.msra.mxu0 0.0
      %966 = vmatprep.subr.mxu0 0.0
      %967 = vmatpush1.msra.mxu0 0.0
      %968 = vmatprep.subr.mxu0 0.0
      %969 = vmatpush1.msra.mxu0 0.0
      %970 = vmatprep.subr.mxu0 0.0
      %971 = vmatpush1.msra.mxu0 0.0
      %972 = vmatprep.subr.mxu0 0.0
      %973 = vmatpush1.msra.mxu0 0.0
      %974 = vmatprep.subr.mxu0 0.0
      %975 = vmatpush1.msra.mxu0 0.0
      %976 = vmatprep.subr.mxu0 0.0
      %977 = vmatpush1.msra.mxu0 0.0
      %978 = vmatprep.subr.mxu0 0.0
      %979 = vmatpush1.msra.mxu0 0.0
      %980 = vmatprep.subr.mxu0 0.0
      %981 = vmatpush1.msra.mxu0 0.0
      %982 = vmatprep.subr.mxu0 0.0
      %983 = vmatpush1.msra.mxu0 0.0
      %984 = vmatprep.subr.mxu0 0.0
      %985 = vmatpush1.msra.mxu0 0.0
      %986 = vmatprep.subr.mxu0 0.0
      %987 = vmatpush1.msra.mxu0 0.0
      %988 = vmatprep.subr.mxu0 0.0
      %989 = vmatpush1.msra.mxu0 0.0
      %990 = vmatprep.subr.mxu0 0.0
      %991 = vmatpush1.msra.mxu0 0.0
      %992 = vmatprep.subr.mxu0 0.0
      %993 = vmatpush1.msra.mxu0 0.0
      %994 = vmatprep.subr.mxu0 0.0
      %995 = vmatpush1.msra.mxu0 0.0
      %996 = vmatprep.subr.mxu0 0.0
      %997 = vmatpush1.msra.mxu0 0.0
      %998 = vmatprep.subr.mxu0 0.0
      %999 = vmatpush1.msra.mxu0 0.0
      %1000 = vmatprep.subr.mxu0 0.0
      %1001 = vmatpush1.msra.mxu0 0.0
      %1002 = vmatprep.subr.mxu0 0.0
      %1003 = vmatpush1.msra.mxu0 0.0
      %1004 = vmatprep.subr.mxu0 0.0
      %1005 = vmatpush1.msra.mxu0 0.0
      %1006 = vmatprep.subr.mxu0 0.0
      %1007 = vmatpush1.msra.mxu0 0.0
      %1008 = vmatprep.subr.mxu0 0.0
      %1009 = vmatpush1.msra.mxu0 0.0
      %1010 = vmatprep.subr.mxu0 0.0
      %1011 = vmatpush1.msra.mxu0 0.0
      %1012 = vmatprep.subr.mxu0 0.0
      %1013 = vmatpush1.msra.mxu0 0.0
      %1014 = vmatprep.subr.mxu0 0.0
      %1015 = vmatpush1.msra.mxu0 0.0
      %1016 = vmatprep.subr.mxu0 0.0
      %1017 = vmatpush1.msra.mxu0 0.0
      %1018 = vmatprep.subr.mxu0 0.0
      %1019 = vmatpush1.msra.mxu0 0.0
      %1020 = vmatprep.subr.mxu0 0.0
      %1021 = vmatpush1.msra.mxu0 0.0
      %1022 = vmatprep.mubr.f32.mxu0 0.0
      %1023 = vmatmul.mubr.f32.gmra.mrb[0].mxu0 %v953
      %v1024 = vpop.f32.mrb[0].mxu0
      %v1025 = vadd.f32 0.0, %v1024
      %v1026 = vpop.f32.mrb[0].mxu0
      %1027 = vmatprep.mubr.f32.mxu0 0.0
      %1028 = vmatmul.mubr.f32.gmra.mrb[0].mxu0 %v956
      %v1029 = vpop.f32.mrb[0].mxu0
      %v1030 = vadd.f32 0.0, %v1029
      %v1031 = vpop.f32.mrb[0].mxu0
      %1032 = vdwg.mxu0
      %v1033 = vadd.f32 %v940, %v1025
      %v1034 = vadd.f32 %v941, %v1030
      %1035 = vrot.lane.b32.xlu0 %v302, 107
      %v1036 = vpop.permute.xlu0 %1035
      %v1038 = vadd.f32 %v945, %v1036
      %s1039 = scalar_lea.vmem %s2, 128
      %v1040 = vld [vmem:[%s1039] sm:$0xff]
      %v1041 = vld [vmem:[%s1039 + $0x8] sm:$0xff]
      %1042 = vrot.lane.b32.xlu0 %v300, 106
      %v1043 = vpop.permute.xlu0 %1042
      %v1046 = vsel %vm313, %v1040, 0
      %v1049 = vsel %vm313, %v1041, 0
      %1051 = vmatprep.subr.mxu0 0.0
      %1052 = vmatpush1.msra.mxu0 %v1043
      %1053 = vmatprep.subr.mxu0 0.0
      %1054 = vmatpush1.msra.mxu0 0.0
      %1055 = vmatprep.subr.mxu0 0.0
      %1056 = vmatpush1.msra.mxu0 0.0
      %1057 = vmatprep.subr.mxu0 0.0
      %1058 = vmatpush1.msra.mxu0 0.0
      %1059 = vmatprep.subr.mxu0 0.0
      %1060 = vmatpush1.msra.mxu0 0.0
      %1061 = vmatprep.subr.mxu0 0.0
      %1062 = vmatpush1.msra.mxu0 0.0
      %1063 = vmatprep.subr.mxu0 0.0
      %1064 = vmatpush1.msra.mxu0 0.0
      %1065 = vmatprep.subr.mxu0 0.0
      %1066 = vmatpush1.msra.mxu0 0.0
      %1067 = vmatprep.subr.mxu0 0.0
      %1068 = vmatpush1.msra.mxu0 0.0
      %1069 = vmatprep.subr.mxu0 0.0
      %1070 = vmatpush1.msra.mxu0 0.0
      %1071 = vmatprep.subr.mxu0 0.0
      %1072 = vmatpush1.msra.mxu0 0.0
      %1073 = vmatprep.subr.mxu0 0.0
      %1074 = vmatpush1.msra.mxu0 0.0
      %1075 = vmatprep.subr.mxu0 0.0
      %1076 = vmatpush1.msra.mxu0 0.0
      %1077 = vmatprep.subr.mxu0 0.0
      %1078 = vmatpush1.msra.mxu0 0.0
      %1079 = vmatprep.subr.mxu0 0.0
      %1080 = vmatpush1.msra.mxu0 0.0
      %1081 = vmatprep.subr.mxu0 0.0
      %1082 = vmatpush1.msra.mxu0 0.0
      %1083 = vmatprep.subr.mxu0 0.0
      %1084 = vmatpush1.msra.mxu0 0.0
      %1085 = vmatprep.subr.mxu0 0.0
      %1086 = vmatpush1.msra.mxu0 0.0
      %1087 = vmatprep.subr.mxu0 0.0
      %1088 = vmatpush1.msra.mxu0 0.0
      %1089 = vmatprep.subr.mxu0 0.0
      %1090 = vmatpush1.msra.mxu0 0.0
      %1091 = vmatprep.subr.mxu0 0.0
      %1092 = vmatpush1.msra.mxu0 0.0
      %1093 = vmatprep.subr.mxu0 0.0
      %1094 = vmatpush1.msra.mxu0 0.0
      %1095 = vmatprep.subr.mxu0 0.0
      %1096 = vmatpush1.msra.mxu0 0.0
      %1097 = vmatprep.subr.mxu0 0.0
      %1098 = vmatpush1.msra.mxu0 0.0
      %1099 = vmatprep.subr.mxu0 0.0
      %1100 = vmatpush1.msra.mxu0 0.0
      %1101 = vmatprep.subr.mxu0 0.0
      %1102 = vmatpush1.msra.mxu0 0.0
      %1103 = vmatprep.subr.mxu0 0.0
      %1104 = vmatpush1.msra.mxu0 0.0
      %1105 = vmatprep.subr.mxu0 0.0
      %1106 = vmatpush1.msra.mxu0 0.0
      %1107 = vmatprep.subr.mxu0 0.0
      %1108 = vmatpush1.msra.mxu0 0.0
      %1109 = vmatprep.subr.mxu0 0.0
      %1110 = vmatpush1.msra.mxu0 0.0
      %1111 = vmatprep.subr.mxu0 0.0
      %1112 = vmatpush1.msra.mxu0 0.0
      %1113 = vmatprep.subr.mxu0 0.0
      %1114 = vmatpush1.msra.mxu0 0.0
      %1115 = vmatprep.mubr.f32.mxu0 0.0
      %1116 = vmatmul.mubr.f32.gmra.mrb[0].mxu0 %v1046
      %v1117 = vpop.f32.mrb[0].mxu0
      %v1118 = vadd.f32 0.0, %v1117
      %v1119 = vpop.f32.mrb[0].mxu0
      %1120 = vmatprep.mubr.f32.mxu0 0.0
      %1121 = vmatmul.mubr.f32.gmra.mrb[0].mxu0 %v1049
      %v1122 = vpop.f32.mrb[0].mxu0
      %v1123 = vadd.f32 0.0, %v1122
      %v1124 = vpop.f32.mrb[0].mxu0
      %1125 = vdwg.mxu0
      %v1126 = vadd.f32 %v1033, %v1118
      %v1127 = vadd.f32 %v1034, %v1123
      %1128 = vrot.lane.b32.xlu0 %v302, 106
      %v1129 = vpop.permute.xlu0 %1128
      %v1131 = vadd.f32 %v1038, %v1129
      %v1132 = vmul.f32 %v1131, 8.0
      %v1133 = vmax.f32 %v1132, 0.0
      %v1134 = vmin.f32 %v1133, 1.0
      %v1135 = vadd.f32 %v1132, 1e-08
      %v1136 = vrcp.pop %v1135
      %v1137 = vmul.f32 72.0, %v1136
      %v1138 = vmul.f32 %v1137, %v1134
      %v1140 = vlaneseq
      %v1141 = vshrl.u32 %v1140, 7
      %v1142 = vsub.s32 0, %v1141
      %v1143 = vrot.slane %v1138, %v1142
      %v1145 = vmul.f32 %v1126, %v1143
      %v1146 = vmul.f32 %v1127, %v1143
      %v1147 = vld [vmem:[%s3] sm:$0xff]
      %v1148 = vld [vmem:[%s3 + $0x8] sm:$0xff]
      %1150 = vset.pattern.permute.xlu0 0
      %1151 = vperm.xlu0 %1150, %v1147
      %v1152 = vpop.permute.xlu0 %1151
      %1155 = vset.pattern.permute.xlu0 0
      %1156 = vperm.xlu0 %1155, %v1148
      %v1157 = vpop.permute.xlu0 %1156
      %v1159 = vadd.f32 %v1145, %v1152
      %v1160 = vadd.f32 %v1146, %v1157
      %v1162 = vlaneseq
      %v1163 = vshrl.u32 %v1162, 7
      %v1164 = vsub.s32 0, %v1163
      %v1165 = vrot.slane %v1134, %v1164
      %v1167 = vmul.f32 %v1159, %v1165
      %v1168 = vmul.f32 %v1160, %v1165
      %vm1169 = vcmask 654336
      %1170 = vst.msk [vmem:[%s295] sm:$0xff] %vm1169, %v1167
      %1171 = vst.msk [vmem:[%s295 + $0x8] sm:$0xff] %vm1169, %v1168
      %vm1172 = vcmask 647168
      %1173 = vst.msk [vmem:[%s298] sm:$0x1] %vm1172, %v1134
      %p1174 = scmp.lt.s32.totalorder %s19, 1
      %s1175 = scalar_select %p1174, %s19, 1
      %s1176 = smul.addr %s1175, 2
      %s1177 = smul.addr %s1176, 8
      %s1178 = scalar_lea.vmem %s6, %s1177
      %p1179 = scmp.lt.s32.totalorder %s19, 1
      %s1180 = scalar_select %p1179, %s19, 1
      %s1181 = scalar_lea.vmem %s7, %s1180
      // Predicated region
      $region45: #{downsample_forward.3} parent=43 // pred_check
        %p1182 = pneg %p173
      $region46: #{downsample_forward.3} parent=43 // pred_check_branch
        %1184 = sbr.rel (%p1182) target = $region48
      $region47: #{downsample_forward.3} parent=43 // pred_region
        _
      $region48: #{downsample_forward.3} parent=43 // pred_fallthru
        _
      // Predicated region
      $region49: #{downsample_forward.3} parent=43 // pred_check
        %p1185 = pneg %p199
      $region50: #{downsample_forward.3} parent=43 // pred_check_branch
        %1187 = sbr.rel (%p1185) target = $region52
      $region51: #{downsample_forward.3} parent=43 // pred_region
        _
      $region52: #{downsample_forward.3} parent=43 // pred_fallthru
        _
    $region44: #{downsample_forward.3} parent=5 // pred_fallthru
      _
    %p1188 = scmp.le.s32.totalorder 2, %s14
    // Predicated region
    $region53: #{downsample_forward.3} parent=5 // pred_check
      %p1189 = pneg %p1188
    $region54: #{downsample_forward.3} parent=5 // pred_check_branch
      %1191 = sbr.rel (%p1189) target = $region56
    $region55: #{downsample_forward.3} parent=5 // pred_region
      %s1192 = ssub.s32 %s14, 2
      // Predicated region
      $region57: #{downsample_forward.3} parent=55 // pred_check
        %p1193 = pneg %p179
      $region58: #{downsample_forward.3} parent=55 // pred_check_branch
        %1195 = sbr.rel (%p1193) target = $region60
      $region59: #{downsample_forward.3} parent=55 // pred_region
        %p1196 = scmp.lt.s32.totalorder %s20, 1
        %s1197 = scalar_select %p1196, %s20, 1
        %s1198 = smul.addr %s1197, 2
        %s1199 = smul.addr %s1198, 8
        %s1200 = scalar_lea.vmem %s6, %s1199
      $region60: #{downsample_forward.3} parent=55 // pred_fallthru
        _
      // Predicated region
      $region61: #{downsample_forward.3} parent=55 // pred_check
        %p1201 = pneg %p205
      $region62: #{downsample_forward.3} parent=55 // pred_check_branch
        %1203 = sbr.rel (%p1201) target = $region64
      $region63: #{downsample_forward.3} parent=55 // pred_region
        %p1204 = scmp.lt.s32.totalorder %s20, 1
        %s1205 = scalar_select %p1204, %s20, 1
        %s1206 = scalar_lea.vmem %s7, %s1205
      $region64: #{downsample_forward.3} parent=55 // pred_fallthru
        _
    $region56: #{downsample_forward.3} parent=5 // pred_fallthru
      _
  $region6: #{downsample_forward.3} parent=0 // loop_footer
    %s18 = sadd.s32 1, %s14
  $region7: #{downsample_forward.3} parent=0 // loop_footer_branch
    %13 = sbr.rel target = $region3
  $region8: #{downsample_forward.3} parent=0 // loop_exit
    _

</llo_original>
